<compile_context>
chip_gen: v7x
topology: tpu7x:2x2x1
jax: 0.10.0
libtpu: 0.0.40
codegen_flags: <defaults>
</compile_context>

<pallas_src>
import functools

import jax
import jax.numpy as jnp
from jax.experimental import pallas as pl
from jax.experimental.pallas import tpu as pltpu

LANE = 128


def _round_up(x, m):
    return (x + m - 1) // m * m


def _vmem_limit_bytes():
    """Per-generation scoped-VMEM budget (raised well above the 16/32 MiB defaults)."""
    try:
        cap = pltpu.get_tpu_info().vmem_capacity_bytes
        return int(cap * 0.78)          # ~100 MiB on 128 MiB parts, ~50 MiB on v7x
    except Exception:
        return 48 * 1024 * 1024         # conservative fallback, valid on every gen


def _fused_graphsage_kernel(adj_ref, deg_ref, x_ref, ws1_ref, wn1_ref,
                            ws2_ref, wn2_ref, b1_ref, b2_ref,
                            o_ref, h_ref, *, tk):
    """Fused 2-layer GraphSAGE ('mean').

    grid = (layer, k); k tiles the neighbor (column) axis of the binary adjacency.
      per k:   o += adj[:, kT:(k+1)T] @ (src[kT:(k+1)T, :] @ W_neigh)   (f32 acc)
      k==last: layer 0: h = relu(o * 1/deg + x @ Ws1 + b1)   -> h_ref (VMEM bf16)
               layer 1: o = o * 1/deg + h @ Ws2 + b2         -> written back to HBM
    The f32 output block itself is the accumulator (constant out index_map).
    """
    layer = pl.program_id(0)
    k = pl.program_id(1)
    nk = pl.num_programs(1)

    @pl.when(k == 0)
    def _init():
        o_ref[...] = jnp.zeros_like(o_ref)

    # Binary {0,1} int8 adjacency tile -> bf16 (exact); MXU contraction, f32 accumulate.
    adj_tile = adj_ref[...].astype(jnp.bfloat16)
    col0 = pl.multiple_of(k * tk, tk)

    @pl.when(layer == 0)
    def _l0():
        tpre = jnp.dot(x_ref[pl.ds(col0, tk), :], wn1_ref[...],
                       preferred_element_type=jnp.float32).astype(jnp.bfloat16)
        o_ref[...] += jnp.dot(adj_tile, tpre, preferred_element_type=jnp.float32)

    @pl.when(layer == 1)
    def _l1():
        tpre = jnp.dot(h_ref[pl.ds(col0, tk), :], wn2_ref[...],
                       preferred_element_type=jnp.float32).astype(jnp.bfloat16)
        o_ref[...] += jnp.dot(adj_tile, tpre, preferred_element_type=jnp.float32)

    @pl.when(k == nk - 1)
    def _finalize():
        @pl.when(layer == 0)
        def _():
            pre = (o_ref[...] * deg_ref[...]            # exact f32 mean normalization
                   + jnp.dot(x_ref[...], ws1_ref[...],
                             preferred_element_type=jnp.float32)
                   + b1_ref[...])
            h_ref[...] = jnp.maximum(pre, 0.0).astype(jnp.bfloat16)

        @pl.when(layer == 1)
        def _():
            o_ref[...] = (o_ref[...] * deg_ref[...]
                          + jnp.dot(h_ref[...], ws2_ref[...],
                                    preferred_element_type=jnp.float32)
                          + b2_ref[...])


def graphsage_forward(edges, x, params, *, tk_stream=512):
    """GraphSAGE.forward (conv1 -> relu -> conv2) as one fused pallas_call.

    edges: (n, n) binary {0,1}; edges[i, j] = 1  <=>  j is an in-neighbor of i.
    """
    n, f_in = x.shape
    f_h = params["w_self1"].shape[1]
    assert edges.shape == (n, n)

    f_in_pad = _round_up(f_in, LANE)
    f_h_pad = _round_up(f_h, LANE)
    vmem_limit = _vmem_limit_bytes()

    # --- tiling / residency decisions (conservatively assume 2x auto double-buffering) ---
    n_pad = _round_up(n, LANE)
    fixed_vmem = (2 * n_pad * f_in_pad * 2                        # x (bf16)
                  + 2 * 2 * (f_in_pad + f_h_pad) * f_h_pad * 2    # 4 weight matrices
                  + 2 * 2 * f_h_pad * 4                           # biases
                  + 2 * n_pad * 4                                 # 1/deg
                  + 2 * n_pad * f_h_pad * 4                       # f32 output/accumulator
                  + n_pad * f_h_pad * 2)                          # h scratch (bf16)
    adj_resident = (fixed_vmem
                    + 2 * n_pad * n_pad          # int8 adj block (double-buffered)
                    + 2 * n_pad * n_pad          # in-kernel bf16 upcast temporary
                    ) <= int(0.80 * vmem_limit)

    if adj_resident:
        tk = n_pad                     # single k step; adj DMA'd once for BOTH layers
    else:
        tk = tk_stream                 # wide (>=512) column tiles; never shrink to 128
        n_pad = _round_up(n, tk)       # pad N instead of shrinking the tile
    nk = n_pad // tk

    # --- operand preparation (zero-padded, lane-dense) ---
    bf16 = jnp.bfloat16
    adj_i8 = jnp.zeros((n_pad, n_pad), jnp.int8).at[:n, :n].set(edges.astype(jnp.int8))
    deg = edges.sum(axis=1)
    inv_deg = jnp.where(deg > 0, 1.0 / jnp.maximum(deg, 1.0), 0.0).astype(jnp.float32)
    inv_deg_p = jnp.zeros((n_pad, 1), jnp.float32).at[:n, 0].set(inv_deg)
    x_p = jnp.zeros((n_pad, f_in_pad), bf16).at[:n, :f_in].set(x.astype(bf16))

    def pad_w(w, rows, cols):
        return jnp.zeros((rows, cols), bf16).at[:w.shape[0], :w.shape[1]].set(w.astype(bf16))

    ws1 = pad_w(params["w_self1"], f_in_pad, f_h_pad)
    wn1 = pad_w(params["w_neigh1"], f_in_pad, f_h_pad)
    ws2 = pad_w(params["w_self2"], f_h_pad, f_h_pad)
    wn2 = pad_w(params["w_neigh2"], f_h_pad, f_h_pad)
    b1 = jnp.zeros((1, f_h_pad), jnp.float32).at[0, :f_h].set(params["b1"].astype(jnp.float32))
    b2 = jnp.zeros((1, f_h_pad), jnp.float32).at[0, :f_h].set(params["b2"].astype(jnp.float32))

    if adj_resident:
        # Constant index map: adjacency is fetched into VMEM once, reused by both layers.
        adj_spec = pl.BlockSpec((n_pad, n_pad), lambda l, k: (0, 0))
    else:
        # Streamed column tiles; 3-deep buffering hides the finalize-step matmul burst.
        adj_spec = pl.BlockSpec((n_pad, tk), lambda l, k: (0, k),
                                pipeline_mode=pl.Buffered(3))

    kernel = functools.partial(_fused_graphsage_kernel, tk=tk)

    flops = int(2 * n_pad * f_in_pad * f_h_pad * 2        # layer-1 pre-projection + self
                + 2 * n_pad * f_h_pad * f_h_pad * 2       # layer-2 pre-projection + self
                + 2 * (2 * n_pad * n_pad * f_h_pad))      # both adjacency contractions
    adj_passes = 1 if adj_resident else 2
    bytes_accessed = int(adj_passes * n_pad * n_pad                  # int8 adjacency
                         + n_pad * f_in_pad * 2                      # x
                         + 2 * (f_in_pad + f_h_pad) * f_h_pad * 2    # weights
                         + 2 * f_h_pad * 4 + n_pad * 4               # biases + 1/deg
                         + n_pad * f_h_pad * 4)                      # output

    out_pad = pl.pallas_call(
        kernel,
        out_shape=jax.ShapeDtypeStruct((n_pad, f_h_pad), jnp.float32),
        grid=(2, nk),  # (layer, neighbor-column tile); layer 1 consumes layer 0's VMEM h
        in_specs=[
            adj_spec,                                                    # adj (int8, binary)
            pl.BlockSpec((n_pad, 1),          lambda l, k: (0, 0)),      # 1/deg (f32)
            pl.BlockSpec((n_pad, f_in_pad),   lambda l, k: (0, 0)),      # x (resident)
            pl.BlockSpec((f_in_pad, f_h_pad), lambda l, k: (0, 0)),      # W_self1
            pl.BlockSpec((f_in_pad, f_h_pad), lambda l, k: (0, 0)),      # W_neigh1
            pl.BlockSpec((f_h_pad, f_h_pad),  lambda l, k: (0, 0)),      # W_self2
            pl.BlockSpec((f_h_pad, f_h_pad),  lambda l, k: (0, 0)),      # W_neigh2
            pl.BlockSpec((1, f_h_pad),        lambda l, k: (0, 0)),      # b1
            pl.BlockSpec((1, f_h_pad),        lambda l, k: (0, 0)),      # b2
        ],
        out_specs=pl.BlockSpec((n_pad, f_h_pad), lambda l, k: (0, 0)),   # f32 accumulator
        scratch_shapes=[pltpu.VMEM((n_pad, f_h_pad), jnp.bfloat16)],     # layer-1 hidden h
        compiler_params=pltpu.CompilerParams(
            # Both axes carry state (resident output accumulator / layer-1 hidden h).
            dimension_semantics=("arbitrary", "arbitrary"),
            vmem_limit_bytes=vmem_limit),
        cost_estimate=pl.CostEstimate(flops=flops, transcendentals=0,
                                      bytes_accessed=bytes_accessed),
    )(adj_i8, inv_deg_p, x_p, ws1, wn1, ws2, wn2, b1, b2)

    return out_pad[:n, :f_h]


def init_params(key, in_feats, h_feats):
    """Deterministic Xavier-ish init for the two SAGEConv layers."""
    k1, k2, k3, k4 = jax.random.split(key, 4)
    s1 = 1.0 / jnp.sqrt(jnp.float32(in_feats))
    s2 = 1.0 / jnp.sqrt(jnp.float32(h_feats))
    return {
        "w_self1":  jax.random.normal(k1, (in_feats, h_feats), jnp.float32) * s1,
        "w_neigh1": jax.random.normal(k2, (in_feats, h_feats), jnp.float32) * s1,
        "b1":       jnp.zeros((h_feats,), jnp.float32),
        "w_self2":  jax.random.normal(k3, (h_feats, h_feats), jnp.float32) * s2,
        "w_neigh2": jax.random.normal(k4, (h_feats, h_feats), jnp.float32) * s2,
        "b2":       jnp.zeros((h_feats,), jnp.float32),
    }


def make_edges(key, n):
    """Deterministic random directed graph as a binary {0,1} adjacency (no self loops).
    edges[i, j] = 1  <=>  j -> i  (j is an in-neighbor of i)."""
    e = jax.random.bernoulli(key, p=0.08, shape=(n, n)).astype(jnp.float32)
    return e * (1.0 - jnp.eye(n, dtype=jnp.float32))


if __name__ == "__main__":
    N, IN_FEATS, H_FEATS = 128, 64, 32   # small synthetic graph / feature sizes

    key = jax.random.PRNGKey(0)
    k_feat, k_graph, k_param = jax.random.split(key, 3)

    x = jax.random.normal(k_feat, (N, IN_FEATS), jnp.float32)
    edges = make_edges(k_graph, N)
    params = init_params(k_param, IN_FEATS, H_FEATS)

    out = jax.block_until_ready(graphsage_forward(edges, x, params))

    # Pure-JAX reference mirroring the kernel's quantization points:
    # bf16 features/weights + bf16 neighbor pre-projection, f32 accumulation,
    # exact binary adjacency with exact f32 1/deg normalization.
    def _b(v):
        return v.astype(jnp.bfloat16).astype(jnp.float32)

    deg = edges.sum(axis=1, keepdims=True)
    inv_deg = jnp.where(deg > 0, 1.0 / jnp.maximum(deg, 1.0), 0.0)
    x_r = _b(x)
    ws1, wn1 = _b(params["w_self1"]), _b(params["w_neigh1"])
    ws2, wn2 = _b(params["w_self2"]), _b(params["w_neigh2"])
    h_ref = jnp.maximum(x_r @ ws1 + (edges @ _b(x_r @ wn1)) * inv_deg + params["b1"], 0.0)
    h_ref = _b(h_ref)
    ref = h_ref @ ws2 + (edges @ _b(h_ref @ wn2)) * inv_deg + params["b2"]

    assert out.shape == (N, H_FEATS)
    assert jnp.isfinite(out).all()
    assert jnp.allclose(out, ref, rtol=2e-2, atol=2e-2), \
        f"max abs err {jnp.abs(out - ref).max()}"
    print("KERNEL_OK")
</pallas_src>

<mosaic_0001>
module attributes {stable_mosaic.version = 11 : i64} {
  func.func @_fused_graphsage_kernel(%arg0: i32, %arg1: i32, %arg2: memref<128x128xi8, #tpu.memory_space<vmem>>, %arg3: memref<128x1xf32, #tpu.memory_space<vmem>>, %arg4: memref<128x128xbf16, #tpu.memory_space<vmem>>, %arg5: memref<128x128xbf16, #tpu.memory_space<vmem>>, %arg6: memref<128x128xbf16, #tpu.memory_space<vmem>>, %arg7: memref<128x128xbf16, #tpu.memory_space<vmem>>, %arg8: memref<128x128xbf16, #tpu.memory_space<vmem>>, %arg9: memref<1x128xf32, #tpu.memory_space<vmem>>, %arg10: memref<1x128xf32, #tpu.memory_space<vmem>>, %arg11: memref<128x128xf32, #tpu.memory_space<vmem>>, %arg12: memref<128x128xbf16, #tpu.memory_space<vmem>>) attributes {dimension_semantics = [#tpu.dimension_semantics<arbitrary>, #tpu.dimension_semantics<arbitrary>], iteration_bounds = array<i64: 2, 1>, scalar_prefetch = 0 : i64, scratch_operands = 1 : i64, tpu.core_type = #tpu.core_type<tc>, window_params = [{pipeline_mode = #tpu.pipeline_mode<synchronous>, transform_indices = @transform_0, window_bounds = array<i64: 128, 128>}, {pipeline_mode = #tpu.pipeline_mode<synchronous>, transform_indices = @transform_1, window_bounds = array<i64: 128, 1>}, {pipeline_mode = #tpu.pipeline_mode<synchronous>, transform_indices = @transform_2, window_bounds = array<i64: 128, 128>}, {pipeline_mode = #tpu.pipeline_mode<synchronous>, transform_indices = @transform_3, window_bounds = array<i64: 128, 128>}, {pipeline_mode = #tpu.pipeline_mode<synchronous>, transform_indices = @transform_4, window_bounds = array<i64: 128, 128>}, {pipeline_mode = #tpu.pipeline_mode<synchronous>, transform_indices = @transform_5, window_bounds = array<i64: 128, 128>}, {pipeline_mode = #tpu.pipeline_mode<synchronous>, transform_indices = @transform_6, window_bounds = array<i64: 128, 128>}, {pipeline_mode = #tpu.pipeline_mode<synchronous>, transform_indices = @transform_7, window_bounds = array<i64: 1, 128>}, {pipeline_mode = #tpu.pipeline_mode<synchronous>, transform_indices = @transform_8, window_bounds = array<i64: 1, 128>}, {pipeline_mode = #tpu.pipeline_mode<synchronous>, transform_indices = @transform_9, window_bounds = array<i64: 128, 128>}]} {
    %c0_i32 = arith.constant 0 : i32
    %0 = arith.cmpi eq, %arg1, %c0_i32 : i32
    %1 = arith.extui %0 : i1 to i32
    %c0_i32_0 = arith.constant 0 : i32
    %2 = arith.cmpi ne, %1, %c0_i32_0 : i32
    scf.if %2 {
      %cst = arith.constant 0.000000e+00 : f32
      %16 = vector.broadcast %cst : f32 to vector<128x128xf32>
      %c0_7 = arith.constant 0 : index
      %c0_8 = arith.constant 0 : index
      %17 = vector.load %arg11[%c0_7, %c0_8] : memref<128x128xf32, #tpu.memory_space<vmem>>, vector<128x128xf32>
      tpu.vector_store %arg11[%c0_7, %c0_8], %16 {strides = array<i32>} : memref<128x128xf32, #tpu.memory_space<vmem>>, vector<128x128xf32>,
    } else {
    }
    %c0 = arith.constant 0 : index
    %c0_1 = arith.constant 0 : index
    %3 = vector.load %arg2[%c0, %c0_1] : memref<128x128xi8, #tpu.memory_space<vmem>>, vector<128x128xi8>
    %4 = arith.sitofp %3 : vector<128x128xi8> to vector<128x128xbf16>
    %c128_i32 = arith.constant 128 : i32
    %5 = arith.muli %arg1, %c128_i32 : i32
    %6 = tpu.assume_multiple %5, 128 : i32
    %c0_i32_2 = arith.constant 0 : i32
    %7 = arith.cmpi eq, %arg0, %c0_i32_2 : i32
    %8 = arith.extui %7 : i1 to i32
    %c0_i32_3 = arith.constant 0 : i32
    %9 = arith.cmpi ne, %8, %c0_i32_3 : i32
    scf.if %9 {
      %16 = arith.index_cast %6 : i32 to index
      %c0_7 = arith.constant 0 : index
      %17 = vector.load %arg4[%16, %c0_7] : memref<128x128xbf16, #tpu.memory_space<vmem>>, vector<128x128xbf16>
      %c0_8 = arith.constant 0 : index
      %c0_9 = arith.constant 0 : index
      %18 = vector.load %arg6[%c0_8, %c0_9] : memref<128x128xbf16, #tpu.memory_space<vmem>>, vector<128x128xbf16>
      %cst = arith.constant dense<0.000000e+00> : vector<128x128xf32>
      %19 = tpu.matmul %17, %18, %cst {dimension_numbers = #tpu.dot_dimension_numbers<[1], [0], [0], [1], [0, 0, 1, 1], [], []>} : vector<128x128xbf16>, vector<128x128xbf16>, vector<128x128xf32> -> vector<128x128xf32>
      %20 = arith.truncf %19 : vector<128x128xf32> to vector<128x128xbf16>
      %c0_10 = arith.constant 0 : index
      %c0_11 = arith.constant 0 : index
      %21 = vector.load %arg11[%c0_10, %c0_11] : memref<128x128xf32, #tpu.memory_space<vmem>>, vector<128x128xf32>
      %cst_12 = arith.constant dense<0.000000e+00> : vector<128x128xf32>
      %22 = tpu.matmul %4, %20, %cst_12 {dimension_numbers = #tpu.dot_dimension_numbers<[1], [0], [0], [1], [0, 0, 1, 1], [], []>} : vector<128x128xbf16>, vector<128x128xbf16>, vector<128x128xf32> -> vector<128x128xf32>
      %23 = arith.addf %21, %22 : vector<128x128xf32>
      %c0_13 = arith.constant 0 : index
      %c0_14 = arith.constant 0 : index
      %24 = vector.load %arg11[%c0_13, %c0_14] : memref<128x128xf32, #tpu.memory_space<vmem>>, vector<128x128xf32>
      tpu.vector_store %arg11[%c0_13, %c0_14], %23 {strides = array<i32>} : memref<128x128xf32, #tpu.memory_space<vmem>>, vector<128x128xf32>,
    } else {
    }
    %c1_i32 = arith.constant 1 : i32
    %10 = arith.cmpi eq, %arg0, %c1_i32 : i32
    %11 = arith.extui %10 : i1 to i32
    %c0_i32_4 = arith.constant 0 : i32
    %12 = arith.cmpi ne, %11, %c0_i32_4 : i32
    scf.if %12 {
      %16 = arith.index_cast %6 : i32 to index
      %c0_7 = arith.constant 0 : index
      %17 = vector.load %arg12[%16, %c0_7] : memref<128x128xbf16, #tpu.memory_space<vmem>>, vector<128x128xbf16>
      %c0_8 = arith.constant 0 : index
      %c0_9 = arith.constant 0 : index
      %18 = vector.load %arg8[%c0_8, %c0_9] : memref<128x128xbf16, #tpu.memory_space<vmem>>, vector<128x128xbf16>
      %cst = arith.constant dense<0.000000e+00> : vector<128x128xf32>
      %19 = tpu.matmul %17, %18, %cst {dimension_numbers = #tpu.dot_dimension_numbers<[1], [0], [0], [1], [0, 0, 1, 1], [], []>} : vector<128x128xbf16>, vector<128x128xbf16>, vector<128x128xf32> -> vector<128x128xf32>
      %20 = arith.truncf %19 : vector<128x128xf32> to vector<128x128xbf16>
      %c0_10 = arith.constant 0 : index
      %c0_11 = arith.constant 0 : index
      %21 = vector.load %arg11[%c0_10, %c0_11] : memref<128x128xf32, #tpu.memory_space<vmem>>, vector<128x128xf32>
      %cst_12 = arith.constant dense<0.000000e+00> : vector<128x128xf32>
      %22 = tpu.matmul %4, %20, %cst_12 {dimension_numbers = #tpu.dot_dimension_numbers<[1], [0], [0], [1], [0, 0, 1, 1], [], []>} : vector<128x128xbf16>, vector<128x128xbf16>, vector<128x128xf32> -> vector<128x128xf32>
      %23 = arith.addf %21, %22 : vector<128x128xf32>
      %c0_13 = arith.constant 0 : index
      %c0_14 = arith.constant 0 : index
      %24 = vector.load %arg11[%c0_13, %c0_14] : memref<128x128xf32, #tpu.memory_space<vmem>>, vector<128x128xf32>
      tpu.vector_store %arg11[%c0_13, %c0_14], %23 {strides = array<i32>} : memref<128x128xf32, #tpu.memory_space<vmem>>, vector<128x128xf32>,
    } else {
    }
    %c0_i32_5 = arith.constant 0 : i32
    %13 = arith.cmpi eq, %arg1, %c0_i32_5 : i32
    %14 = arith.extui %13 : i1 to i32
    %c0_i32_6 = arith.constant 0 : i32
    %15 = arith.cmpi ne, %14, %c0_i32_6 : i32
    scf.if %15 {
      %c0_i32_7 = arith.constant 0 : i32
      %16 = arith.cmpi eq, %arg0, %c0_i32_7 : i32
      %17 = arith.extui %16 : i1 to i32
      %c0_i32_8 = arith.constant 0 : i32
      %18 = arith.cmpi ne, %17, %c0_i32_8 : i32
      scf.if %18 {
        %c0_11 = arith.constant 0 : index
        %c0_12 = arith.constant 0 : index
        %22 = vector.load %arg11[%c0_11, %c0_12] : memref<128x128xf32, #tpu.memory_space<vmem>>, vector<128x128xf32>
        %c0_13 = arith.constant 0 : index
        %c0_14 = arith.constant 0 : index
        %23 = vector.load %arg3[%c0_13, %c0_14] : memref<128x1xf32, #tpu.memory_space<vmem>>, vector<128x1xf32>
        %24 = vector.broadcast %23 : vector<128x1xf32> to vector<128x128xf32>
        %25 = arith.mulf %22, %24 : vector<128x128xf32>
        %c0_15 = arith.constant 0 : index
        %c0_16 = arith.constant 0 : index
        %26 = vector.load %arg4[%c0_15, %c0_16] : memref<128x128xbf16, #tpu.memory_space<vmem>>, vector<128x128xbf16>
        %c0_17 = arith.constant 0 : index
        %c0_18 = arith.constant 0 : index
        %27 = vector.load %arg5[%c0_17, %c0_18] : memref<128x128xbf16, #tpu.memory_space<vmem>>, vector<128x128xbf16>
        %cst = arith.constant dense<0.000000e+00> : vector<128x128xf32>
        %28 = tpu.matmul %26, %27, %cst {dimension_numbers = #tpu.dot_dimension_numbers<[1], [0], [0], [1], [0, 0, 1, 1], [], []>} : vector<128x128xbf16>, vector<128x128xbf16>, vector<128x128xf32> -> vector<128x128xf32>
        %29 = arith.addf %25, %28 : vector<128x128xf32>
        %c0_19 = arith.constant 0 : index
        %c0_20 = arith.constant 0 : index
        %30 = vector.load %arg9[%c0_19, %c0_20] : memref<1x128xf32, #tpu.memory_space<vmem>>, vector<1x128xf32>
        %31 = vector.broadcast %30 : vector<1x128xf32> to vector<128x128xf32>
        %32 = arith.addf %29, %31 : vector<128x128xf32>
        %cst_21 = arith.constant 0.000000e+00 : f32
        %33 = vector.broadcast %cst_21 : f32 to vector<128x128xf32>
        %34 = arith.maximumf %32, %33 : vector<128x128xf32>
        %35 = arith.truncf %34 : vector<128x128xf32> to vector<128x128xbf16>
        %c0_22 = arith.constant 0 : index
        %c0_23 = arith.constant 0 : index
        %36 = vector.load %arg12[%c0_22, %c0_23] : memref<128x128xbf16, #tpu.memory_space<vmem>>, vector<128x128xbf16>
        tpu.vector_store %arg12[%c0_22, %c0_23], %35 {strides = array<i32>} : memref<128x128xbf16, #tpu.memory_space<vmem>>, vector<128x128xbf16>,
      } else {
      }
      %c1_i32_9 = arith.constant 1 : i32
      %19 = arith.cmpi eq, %arg0, %c1_i32_9 : i32
      %20 = arith.extui %19 : i1 to i32
      %c0_i32_10 = arith.constant 0 : i32
      %21 = arith.cmpi ne, %20, %c0_i32_10 : i32
      scf.if %21 {
        %c0_11 = arith.constant 0 : index
        %c0_12 = arith.constant 0 : index
        %22 = vector.load %arg11[%c0_11, %c0_12] : memref<128x128xf32, #tpu.memory_space<vmem>>, vector<128x128xf32>
        %c0_13 = arith.constant 0 : index
        %c0_14 = arith.constant 0 : index
        %23 = vector.load %arg3[%c0_13, %c0_14] : memref<128x1xf32, #tpu.memory_space<vmem>>, vector<128x1xf32>
        %24 = vector.broadcast %23 : vector<128x1xf32> to vector<128x128xf32>
        %25 = arith.mulf %22, %24 : vector<128x128xf32>
        %c0_15 = arith.constant 0 : index
        %c0_16 = arith.constant 0 : index
        %26 = vector.load %arg12[%c0_15, %c0_16] : memref<128x128xbf16, #tpu.memory_space<vmem>>, vector<128x128xbf16>
        %c0_17 = arith.constant 0 : index
        %c0_18 = arith.constant 0 : index
        %27 = vector.load %arg7[%c0_17, %c0_18] : memref<128x128xbf16, #tpu.memory_space<vmem>>, vector<128x128xbf16>
        %cst = arith.constant dense<0.000000e+00> : vector<128x128xf32>
        %28 = tpu.matmul %26, %27, %cst {dimension_numbers = #tpu.dot_dimension_numbers<[1], [0], [0], [1], [0, 0, 1, 1], [], []>} : vector<128x128xbf16>, vector<128x128xbf16>, vector<128x128xf32> -> vector<128x128xf32>
        %29 = arith.addf %25, %28 : vector<128x128xf32>
        %c0_19 = arith.constant 0 : index
        %c0_20 = arith.constant 0 : index
        %30 = vector.load %arg10[%c0_19, %c0_20] : memref<1x128xf32, #tpu.memory_space<vmem>>, vector<1x128xf32>
        %31 = vector.broadcast %30 : vector<1x128xf32> to vector<128x128xf32>
        %32 = arith.addf %29, %31 : vector<128x128xf32>
        %c0_21 = arith.constant 0 : index
        %c0_22 = arith.constant 0 : index
        %33 = vector.load %arg11[%c0_21, %c0_22] : memref<128x128xf32, #tpu.memory_space<vmem>>, vector<128x128xf32>
        tpu.vector_store %arg11[%c0_21, %c0_22], %32 {strides = array<i32>} : memref<128x128xf32, #tpu.memory_space<vmem>>, vector<128x128xf32>,
      } else {
      }
    } else {
    }
    return
  }
  func.func @transform_0(%arg0: i32, %arg1: i32) -> (i32, i32) {
    %c0_i32 = arith.constant 0 : i32
    %c0_i32_0 = arith.constant 0 : i32
    %c0_i32_1 = arith.constant 0 : i32
    return %c0_i32, %c0_i32_0 : i32, i32
  }
  func.func @transform_1(%arg0: i32, %arg1: i32) -> (i32, i32) {
    %c0_i32 = arith.constant 0 : i32
    %c0_i32_0 = arith.constant 0 : i32
    %c0_i32_1 = arith.constant 0 : i32
    return %c0_i32, %c0_i32_0 : i32, i32
  }
  func.func @transform_2(%arg0: i32, %arg1: i32) -> (i32, i32) {
    %c0_i32 = arith.constant 0 : i32
    %c0_i32_0 = arith.constant 0 : i32
    %c0_i32_1 = arith.constant 0 : i32
    return %c0_i32, %c0_i32_0 : i32, i32
  }
  func.func @transform_3(%arg0: i32, %arg1: i32) -> (i32, i32) {
    %c0_i32 = arith.constant 0 : i32
    %c0_i32_0 = arith.constant 0 : i32
    %c0_i32_1 = arith.constant 0 : i32
    return %c0_i32, %c0_i32_0 : i32, i32
  }
  func.func @transform_4(%arg0: i32, %arg1: i32) -> (i32, i32) {
    %c0_i32 = arith.constant 0 : i32
    %c0_i32_0 = arith.constant 0 : i32
    %c0_i32_1 = arith.constant 0 : i32
    return %c0_i32, %c0_i32_0 : i32, i32
  }
  func.func @transform_5(%arg0: i32, %arg1: i32) -> (i32, i32) {
    %c0_i32 = arith.constant 0 : i32
    %c0_i32_0 = arith.constant 0 : i32
    %c0_i32_1 = arith.constant 0 : i32
    return %c0_i32, %c0_i32_0 : i32, i32
  }
  func.func @transform_6(%arg0: i32, %arg1: i32) -> (i32, i32) {
    %c0_i32 = arith.constant 0 : i32
    %c0_i32_0 = arith.constant 0 : i32
    %c0_i32_1 = arith.constant 0 : i32
    return %c0_i32, %c0_i32_0 : i32, i32
  }
  func.func @transform_7(%arg0: i32, %arg1: i32) -> (i32, i32) {
    %c0_i32 = arith.constant 0 : i32
    %c0_i32_0 = arith.constant 0 : i32
    %c0_i32_1 = arith.constant 0 : i32
    return %c0_i32, %c0_i32_0 : i32, i32
  }
  func.func @transform_8(%arg0: i32, %arg1: i32) -> (i32, i32) {
    %c0_i32 = arith.constant 0 : i32
    %c0_i32_0 = arith.constant 0 : i32
    %c0_i32_1 = arith.constant 0 : i32
    return %c0_i32, %c0_i32_0 : i32, i32
  }
  func.func @transform_9(%arg0: i32, %arg1: i32) -> (i32, i32) {
    %c0_i32 = arith.constant 0 : i32
    %c0_i32_0 = arith.constant 0 : i32
    %c0_i32_1 = arith.constant 0 : i32
    return %c0_i32, %c0_i32_0 : i32, i32
  }
}

</mosaic_0001>

<llo_original>
// kernel: tpu_custom_call.1
$region0: #{tpu_custom_call.1}
  #allocation0 [shape = 'u32[]', space=smem, size = 0x4, offset = 0x4, fixed_abs, tag = 'smem constant byte address 0x4 - core index']
  #allocation1 [shape = 'u32[144,128]{1,0:T(1,128)}', space=vmem, size = 0x12000, scoped, tag = 'internal scratch']
  #allocation2 [shape = 'bf16[128,128]{1,0:T(16,128)(2,1)}', space=vmem, size = 0x8000, scoped, tag = 'scratch operand']
  %s0 = inlined_call_operand.hbm [shape: s8[128,128], index: 0, kind: input, shape index: {}]
  %s1 = inlined_call_operand.vmem [shape: f32[128,1], index: 1, kind: input, shape index: {}]
  %s2 = inlined_call_operand.vmem [shape: bf16[128,128], index: 2, kind: input, shape index: {}]
  %s3 = inlined_call_operand.vmem [shape: bf16[128,128], index: 3, kind: input, shape index: {}]
  %s4 = inlined_call_operand.hbm [shape: bf16[128,128], index: 4, kind: input, shape index: {}]
  %s5 = inlined_call_operand.hbm [shape: bf16[128,128], index: 5, kind: input, shape index: {}]
  %s6 = inlined_call_operand.hbm [shape: bf16[128,128], index: 6, kind: input, shape index: {}]
  %s7 = inlined_call_operand.vmem [shape: f32[1,128], index: 7, kind: input, shape index: {}]
  %s8 = inlined_call_operand.vmem [shape: f32[1,128], index: 8, kind: input, shape index: {}]
  %s9 = inlined_call_operand.hbm [shape: f32[128,128], index: 9, kind: output, shape index: {}]
  %s10 = sld [smem:[#allocation0]]
  $region109: #{tpu_custom_call.1} parent=0
    _
  %s12 = ssub.s32 1, %s10
  %s13 = scalar_select 0, %s12, %s10
  $region1: #{tpu_custom_call.1} parent=0
    #allocation3 [shape = 'u8[16384]{0}', space=vmem, size = 0x4000, scoped, tag = 'input window, operand 0, single buffered']
    #allocation4 [shape = 's32[2]{0}', space=sflag, size = 0x8, scoped, tag = 'scoped memory for tpu_custom_call.1']
    #allocation5 [shape = 's32[2]{0}', space=sflag, size = 0x8, scoped, tag = 'scoped memory for tpu_custom_call.1']
    #allocation6 [shape = 'u8[32768]{0}', space=vmem, size = 0x8000, scoped, tag = 'input window, operand 4, single buffered']
    #allocation7 [shape = 's32[1]{0}', space=sflag, size = 0x4, scoped, tag = 'scoped memory for tpu_custom_call.1']
    #allocation8 [shape = 'u8[32768]{0}', space=vmem, size = 0x8000, scoped, tag = 'input window, operand 5, single buffered']
    #allocation9 [shape = 'u8[32768]{0}', space=vmem, size = 0x8000, scoped, tag = 'input window, operand 6, single buffered']
    #allocation10 [shape = 's32[1]{0}', space=sflag, size = 0x4, scoped, tag = 'scoped memory for tpu_custom_call.1']
    #allocation11 [shape = 'u8[65536]{0}', space=vmem, size = 0x10000, scoped, tag = 'output window, operand 0, single buffered']
    %14 = vsyncpa [#allocation4], 0
    %15 = vsyncpa [#allocation7], 0
    %16 = vsyncpa [#allocation10], 0
    %17 = vsyncpa [#allocation5], 0
    loop: start=0, step=1, limit=4
    $region2: #{tpu_custom_call.1} parent=1 // loop_pre_header
      _
    $region3: #{tpu_custom_call.1} parent=1 // loop_header
      %s19 = sphi 0, %s23
      %p20 = scmp.ge.s32.totalorder %s19, 4
      %s26 = sphi 0, %s38
      %s27 = sphi 0, %s34
      %s28 = sphi 0, %s26
      %s29 = sphi 0, %s27
      %s30 = sphi 0, %s28
      %s31 = sphi 0, %s29
      %s39 = sphi 0, %s39
      %s41 = sphi 0, %s39
      %s42 = sphi 0, %s41
      %s56 = sphi 0, %s42
      %s60 = sphi 0, %s60
      %s62 = sphi 0, %s60
      %s63 = sphi 0, %s62
      %s77 = sphi 0, %s63
      %s81 = sphi 0, %s81
      %s83 = sphi 0, %s81
      %s84 = sphi 0, %s83
      %s98 = sphi 0, %s84
      %s102 = sphi 0, %s102
      %s104 = sphi 0, %s102
      %s105 = sphi 0, %s104
      %s119 = sphi 0, %s105
      %s123 = sphi 0, %s123
      %s125 = sphi 0, %s123
      %s126 = sphi 0, %s125
      %s140 = sphi 0, %s126
      %s144 = sphi 0, %s144
      %s146 = sphi 0, %s144
      %s147 = sphi 0, %s146
      %s161 = sphi 0, %s147
      %s165 = sphi 0, %s165
      %s167 = sphi 0, %s165
      %s168 = sphi 0, %s167
      %s182 = sphi 0, %s168
      %s186 = sphi 0, %s186
      %s188 = sphi 0, %s186
      %s189 = sphi 0, %s188
      %s203 = sphi 0, %s189
      %s207 = sphi 0, %s207
      %s209 = sphi 0, %s207
      %s210 = sphi 0, %s209
      %s224 = sphi 0, %s210
      %s228 = sphi 0, %s228
      %s230 = sphi 0, %s228
      %s231 = sphi 0, %s230
      %s245 = sphi 0, %s231
    $region4: #{tpu_custom_call.1} parent=1 // loop_header_branch
      %22 = sbr.rel (%p20) target = $region8
    $region5: #{tpu_custom_call.1} parent=1 // loop_body
      %s24 = ssub.s32 %s19, 1
      %s25 = ssub.s32 %s19, 2
      %s32 = sadd.s32 1, %s27
      %p33 = scmp.ge.s32.totalorder %s32, 1
      %s34 = scalar_select %p33, 0, %s32
      %s35 = sadd.s32 1, %s26
      %s36 = scalar_select %p33, %s35, %s26
      %p37 = scmp.ge.s32.totalorder %s36, 2
      %s38 = scalar_select %p37, 0, %s36
      %s40 = sadd.s32 %s39, 1
      %p43 = scmp.eq.s32.totalorder %s19, 1
      %p44 = scmp.ne.s32.totalorder %s39, %s41
      %p45 = scmp.eq.s32.totalorder %s19, 0
      %p46 = por %p44, %p45
      %p47 = scmp.ne.s32.totalorder %s39, %s41
      %p48 = scmp.eq.s32.totalorder %s24, 1
      %p49 = por %p47, %p48
      %p50 = scmp.ne.s32.totalorder %s41, %s42
      %p51 = scmp.eq.s32.totalorder %s24, 0
      %p52 = por %p50, %p51
      %p53 = scmp.ne.s32.totalorder %s41, %s42
      %p54 = scmp.eq.s32.totalorder %s25, 1
      %p55 = por %p53, %p54
      %p57 = scmp.ne.s32.totalorder %s42, %s56
      %p58 = scmp.eq.s32.totalorder %s25, 0
      %p59 = por %p57, %p58
      %s61 = sadd.s32 %s60, 1
      %p64 = scmp.eq.s32.totalorder %s19, 1
      %p65 = scmp.ne.s32.totalorder %s60, %s62
      %p66 = scmp.eq.s32.totalorder %s19, 0
      %p67 = por %p65, %p66
      %p68 = scmp.ne.s32.totalorder %s60, %s62
      %p69 = scmp.eq.s32.totalorder %s24, 1
      %p70 = por %p68, %p69
      %p71 = scmp.ne.s32.totalorder %s62, %s63
      %p72 = scmp.eq.s32.totalorder %s24, 0
      %p73 = por %p71, %p72
      %p74 = scmp.ne.s32.totalorder %s62, %s63
      %p75 = scmp.eq.s32.totalorder %s25, 1
      %p76 = por %p74, %p75
      %p78 = scmp.ne.s32.totalorder %s63, %s77
      %p79 = scmp.eq.s32.totalorder %s25, 0
      %p80 = por %p78, %p79
      %s82 = sadd.s32 %s81, 1
      %p85 = scmp.eq.s32.totalorder %s19, 1
      %p86 = scmp.ne.s32.totalorder %s81, %s83
      %p87 = scmp.eq.s32.totalorder %s19, 0
      %p88 = por %p86, %p87
      %p89 = scmp.ne.s32.totalorder %s81, %s83
      %p90 = scmp.eq.s32.totalorder %s24, 1
      %p91 = por %p89, %p90
      %p92 = scmp.ne.s32.totalorder %s83, %s84
      %p93 = scmp.eq.s32.totalorder %s24, 0
      %p94 = por %p92, %p93
      %p95 = scmp.ne.s32.totalorder %s83, %s84
      %p96 = scmp.eq.s32.totalorder %s25, 1
      %p97 = por %p95, %p96
      %p99 = scmp.ne.s32.totalorder %s84, %s98
      %p100 = scmp.eq.s32.totalorder %s25, 0
      %p101 = por %p99, %p100
      %s103 = sadd.s32 %s102, 1
      %p106 = scmp.eq.s32.totalorder %s19, 1
      %p107 = scmp.ne.s32.totalorder %s102, %s104
      %p108 = scmp.eq.s32.totalorder %s19, 0
      %p109 = por %p107, %p108
      %p110 = scmp.ne.s32.totalorder %s102, %s104
      %p111 = scmp.eq.s32.totalorder %s24, 1
      %p112 = por %p110, %p111
      %p113 = scmp.ne.s32.totalorder %s104, %s105
      %p114 = scmp.eq.s32.totalorder %s24, 0
      %p115 = por %p113, %p114
      %p116 = scmp.ne.s32.totalorder %s104, %s105
      %p117 = scmp.eq.s32.totalorder %s25, 1
      %p118 = por %p116, %p117
      %p120 = scmp.ne.s32.totalorder %s105, %s119
      %p121 = scmp.eq.s32.totalorder %s25, 0
      %p122 = por %p120, %p121
      %s124 = sadd.s32 %s123, 1
      %p127 = scmp.eq.s32.totalorder %s19, 1
      %p128 = scmp.ne.s32.totalorder %s123, %s125
      %p129 = scmp.eq.s32.totalorder %s19, 0
      %p130 = por %p128, %p129
      %p131 = scmp.ne.s32.totalorder %s123, %s125
      %p132 = scmp.eq.s32.totalorder %s24, 1
      %p133 = por %p131, %p132
      %p134 = scmp.ne.s32.totalorder %s125, %s126
      %p135 = scmp.eq.s32.totalorder %s24, 0
      %p136 = por %p134, %p135
      %p137 = scmp.ne.s32.totalorder %s125, %s126
      %p138 = scmp.eq.s32.totalorder %s25, 1
      %p139 = por %p137, %p138
      %p141 = scmp.ne.s32.totalorder %s126, %s140
      %p142 = scmp.eq.s32.totalorder %s25, 0
      %p143 = por %p141, %p142
      %s145 = sadd.s32 %s144, 1
      %p148 = scmp.eq.s32.totalorder %s19, 1
      %p149 = scmp.ne.s32.totalorder %s144, %s146
      %p150 = scmp.eq.s32.totalorder %s19, 0
      %p151 = por %p149, %p150
      %p152 = scmp.ne.s32.totalorder %s144, %s146
      %p153 = scmp.eq.s32.totalorder %s24, 1
      %p154 = por %p152, %p153
      %p155 = scmp.ne.s32.totalorder %s146, %s147
      %p156 = scmp.eq.s32.totalorder %s24, 0
      %p157 = por %p155, %p156
      %p158 = scmp.ne.s32.totalorder %s146, %s147
      %p159 = scmp.eq.s32.totalorder %s25, 1
      %p160 = por %p158, %p159
      %p162 = scmp.ne.s32.totalorder %s147, %s161
      %p163 = scmp.eq.s32.totalorder %s25, 0
      %p164 = por %p162, %p163
      %s166 = sadd.s32 %s165, 1
      %p169 = scmp.eq.s32.totalorder %s19, 1
      %p170 = scmp.ne.s32.totalorder %s165, %s167
      %p171 = scmp.eq.s32.totalorder %s19, 0
      %p172 = por %p170, %p171
      %p173 = scmp.ne.s32.totalorder %s165, %s167
      %p174 = scmp.eq.s32.totalorder %s24, 1
      %p175 = por %p173, %p174
      %p176 = scmp.ne.s32.totalorder %s167, %s168
      %p177 = scmp.eq.s32.totalorder %s24, 0
      %p178 = por %p176, %p177
      %p179 = scmp.ne.s32.totalorder %s167, %s168
      %p180 = scmp.eq.s32.totalorder %s25, 1
      %p181 = por %p179, %p180
      %p183 = scmp.ne.s32.totalorder %s168, %s182
      %p184 = scmp.eq.s32.totalorder %s25, 0
      %p185 = por %p183, %p184
      %s187 = sadd.s32 %s186, 1
      %p190 = scmp.eq.s32.totalorder %s19, 1
      %p191 = scmp.ne.s32.totalorder %s186, %s188
      %p192 = scmp.eq.s32.totalorder %s19, 0
      %p193 = por %p191, %p192
      %p194 = scmp.ne.s32.totalorder %s186, %s188
      %p195 = scmp.eq.s32.totalorder %s24, 1
      %p196 = por %p194, %p195
      %p197 = scmp.ne.s32.totalorder %s188, %s189
      %p198 = scmp.eq.s32.totalorder %s24, 0
      %p199 = por %p197, %p198
      %p200 = scmp.ne.s32.totalorder %s188, %s189
      %p201 = scmp.eq.s32.totalorder %s25, 1
      %p202 = por %p200, %p201
      %p204 = scmp.ne.s32.totalorder %s189, %s203
      %p205 = scmp.eq.s32.totalorder %s25, 0
      %p206 = por %p204, %p205
      %s208 = sadd.s32 %s207, 1
      %p211 = scmp.eq.s32.totalorder %s19, 1
      %p212 = scmp.ne.s32.totalorder %s207, %s209
      %p213 = scmp.eq.s32.totalorder %s19, 0
      %p214 = por %p212, %p213
      %p215 = scmp.ne.s32.totalorder %s207, %s209
      %p216 = scmp.eq.s32.totalorder %s24, 1
      %p217 = por %p215, %p216
      %p218 = scmp.ne.s32.totalorder %s209, %s210
      %p219 = scmp.eq.s32.totalorder %s24, 0
      %p220 = por %p218, %p219
      %p221 = scmp.ne.s32.totalorder %s209, %s210
      %p222 = scmp.eq.s32.totalorder %s25, 1
      %p223 = por %p221, %p222
      %p225 = scmp.ne.s32.totalorder %s210, %s224
      %p226 = scmp.eq.s32.totalorder %s25, 0
      %p227 = por %p225, %p226
      %s229 = sadd.s32 %s228, 1
      %p232 = scmp.eq.s32.totalorder %s19, 1
      %p233 = scmp.ne.s32.totalorder %s228, %s230
      %p234 = scmp.eq.s32.totalorder %s19, 0
      %p235 = por %p233, %p234
      %p236 = scmp.ne.s32.totalorder %s228, %s230
      %p237 = scmp.eq.s32.totalorder %s24, 1
      %p238 = por %p236, %p237
      %p239 = scmp.ne.s32.totalorder %s230, %s231
      %p240 = scmp.eq.s32.totalorder %s24, 0
      %p241 = por %p239, %p240
      %p242 = scmp.ne.s32.totalorder %s230, %s231
      %p243 = scmp.eq.s32.totalorder %s25, 1
      %p244 = por %p242, %p243
      %p246 = scmp.ne.s32.totalorder %s231, %s245
      %p247 = scmp.eq.s32.totalorder %s25, 0
      %p248 = por %p246, %p247
      %p249 = scmp.le.s32.totalorder 1, %s19
      %p250 = scmp.lt.s32.totalorder %s19, 3
      %p251 = pnand %p249, %p250
      %p252 = pneg %p251
      // Predicated region
      $region9: #{tpu_custom_call.1} parent=5 // pred_check
        _
      $region10: #{tpu_custom_call.1} parent=5 // pred_check_branch
        %254 = sbr.rel (%p251) target = $region12
      $region11: #{tpu_custom_call.1} parent=5 // pred_region
        %s255 = ssub.s32 %s19, 1
        // Predicated region
        $region13: #{tpu_custom_call.1} parent=11 // pred_check
          %p256 = pneg %p52
        $region14: #{tpu_custom_call.1} parent=11 // pred_check_branch
          %258 = sbr.rel (%p256) target = $region16
        $region15: #{tpu_custom_call.1} parent=11 // pred_region
          %s260 = ssub.s32 512, 512
          %261 = vsyncadd [#allocation4], %s260
          %s262 = sshll.u32 [#allocation3], 4
          %s263 = int_to_ptr.vmem [resolvable:$true] %s262
          %268 = dma.hbm_to_vmem [thread:$0]  %s0, 512, %s263, [#allocation4], 128, 128, 8
        $region16: #{tpu_custom_call.1} parent=11 // pred_fallthru
          _
        // Predicated region
        $region17: #{tpu_custom_call.1} parent=11 // pred_check
          %p269 = pneg %p73
        $region18: #{tpu_custom_call.1} parent=11 // pred_check_branch
          %271 = sbr.rel (%p269) target = $region20
        $region19: #{tpu_custom_call.1} parent=11 // pred_region
          _
        $region20: #{tpu_custom_call.1} parent=11 // pred_fallthru
          _
        // Predicated region
        $region21: #{tpu_custom_call.1} parent=11 // pred_check
          %p272 = pneg %p94
        $region22: #{tpu_custom_call.1} parent=11 // pred_check_branch
          %274 = sbr.rel (%p272) target = $region24
        $region23: #{tpu_custom_call.1} parent=11 // pred_region
          _
        $region24: #{tpu_custom_call.1} parent=11 // pred_fallthru
          _
        // Predicated region
        $region25: #{tpu_custom_call.1} parent=11 // pred_check
          %p275 = pneg %p115
        $region26: #{tpu_custom_call.1} parent=11 // pred_check_branch
          %277 = sbr.rel (%p275) target = $region28
        $region27: #{tpu_custom_call.1} parent=11 // pred_region
          _
        $region28: #{tpu_custom_call.1} parent=11 // pred_fallthru
          _
        // Predicated region
        $region29: #{tpu_custom_call.1} parent=11 // pred_check
          %p278 = pneg %p136
        $region30: #{tpu_custom_call.1} parent=11 // pred_check_branch
          %280 = sbr.rel (%p278) target = $region32
        $region31: #{tpu_custom_call.1} parent=11 // pred_region
          %s282 = ssub.s32 1024, 1024
          %283 = vsyncadd [#allocation7], %s282
          %s284 = sshll.u32 [#allocation6], 4
          %s285 = int_to_ptr.vmem [resolvable:$true] %s284
          %290 = dma.hbm_to_vmem [thread:$0]  %s4, 1024, %s285, [#allocation7], 64, 64, 4
        $region32: #{tpu_custom_call.1} parent=11 // pred_fallthru
          _
        // Predicated region
        $region33: #{tpu_custom_call.1} parent=11 // pred_check
          %p291 = pneg %p157
        $region34: #{tpu_custom_call.1} parent=11 // pred_check_branch
          %293 = sbr.rel (%p291) target = $region36
        $region35: #{tpu_custom_call.1} parent=11 // pred_region
          %s295 = ssub.s32 1024, 1024
          %296 = vsyncadd [#allocation7], %s295
          %s297 = sshll.u32 [#allocation8], 4
          %s298 = int_to_ptr.vmem [resolvable:$true] %s297
          %303 = dma.hbm_to_vmem [thread:$0]  %s5, 1024, %s298, [#allocation7], 64, 64, 4
        $region36: #{tpu_custom_call.1} parent=11 // pred_fallthru
          _
        // Predicated region
        $region37: #{tpu_custom_call.1} parent=11 // pred_check
          %p304 = pneg %p178
        $region38: #{tpu_custom_call.1} parent=11 // pred_check_branch
          %306 = sbr.rel (%p304) target = $region40
        $region39: #{tpu_custom_call.1} parent=11 // pred_region
          %s308 = ssub.s32 1024, 1024
          %309 = vsyncadd [#allocation10], %s308
          %s310 = sshll.u32 [#allocation9], 4
          %s311 = int_to_ptr.vmem [resolvable:$true] %s310
          %316 = dma.hbm_to_vmem [thread:$0]  %s6, 1024, %s311, [#allocation10], 64, 64, 4
        $region40: #{tpu_custom_call.1} parent=11 // pred_fallthru
          _
        // Predicated region
        $region41: #{tpu_custom_call.1} parent=11 // pred_check
          %p317 = pneg %p199
        $region42: #{tpu_custom_call.1} parent=11 // pred_check_branch
          %319 = sbr.rel (%p317) target = $region44
        $region43: #{tpu_custom_call.1} parent=11 // pred_region
          _
        $region44: #{tpu_custom_call.1} parent=11 // pred_fallthru
          _
        // Predicated region
        $region45: #{tpu_custom_call.1} parent=11 // pred_check
          %p320 = pneg %p220
        $region46: #{tpu_custom_call.1} parent=11 // pred_check_branch
          %322 = sbr.rel (%p320) target = $region48
        $region47: #{tpu_custom_call.1} parent=11 // pred_region
          _
        $region48: #{tpu_custom_call.1} parent=11 // pred_fallthru
          _
      $region12: #{tpu_custom_call.1} parent=5 // pred_fallthru
        _
      %p323 = scmp.lt.s32.totalorder %s19, 2
      // Predicated region
      $region49: #{tpu_custom_call.1} parent=5 // pred_check
        %p324 = pneg %p323
      $region50: #{tpu_custom_call.1} parent=5 // pred_check_branch
        %326 = sbr.rel (%p324) target = $region52
      $region51: #{tpu_custom_call.1} parent=5 // pred_region
        _
      $region52: #{tpu_custom_call.1} parent=5 // pred_fallthru
        _
      %p327 = scmp.le.s32.totalorder 1, %s19
      %p328 = scmp.lt.s32.totalorder %s19, 3
      %p329 = pnand %p327, %p328
      %p330 = pneg %p329
      // Predicated region
      $region53: #{tpu_custom_call.1} parent=5 // pred_check
        _
      $region54: #{tpu_custom_call.1} parent=5 // pred_check_branch
        %332 = sbr.rel (%p329) target = $region56
      $region55: #{tpu_custom_call.1} parent=5 // pred_region
        %s333 = ssub.s32 %s19, 1
        // Predicated region
        $region57: #{tpu_custom_call.1} parent=55 // pred_check
          %p334 = pneg %p52
        $region58: #{tpu_custom_call.1} parent=55 // pred_check_branch
          %336 = sbr.rel (%p334) target = $region60
        $region59: #{tpu_custom_call.1} parent=55 // pred_region
          %337 = dma.done [#allocation4], 512
        $region60: #{tpu_custom_call.1} parent=55 // pred_fallthru
          _
        // Predicated region
        $region61: #{tpu_custom_call.1} parent=55 // pred_check
          %p338 = pneg %p136
        $region62: #{tpu_custom_call.1} parent=55 // pred_check_branch
          %340 = sbr.rel (%p338) target = $region64
        $region63: #{tpu_custom_call.1} parent=55 // pred_region
          %341 = dma.done [#allocation7], 1024
        $region64: #{tpu_custom_call.1} parent=55 // pred_fallthru
          _
        // Predicated region
        $region65: #{tpu_custom_call.1} parent=55 // pred_check
          %p342 = pneg %p157
        $region66: #{tpu_custom_call.1} parent=55 // pred_check_branch
          %344 = sbr.rel (%p342) target = $region68
        $region67: #{tpu_custom_call.1} parent=55 // pred_region
          %345 = dma.done [#allocation7], 1024
        $region68: #{tpu_custom_call.1} parent=55 // pred_fallthru
          _
        // Predicated region
        $region69: #{tpu_custom_call.1} parent=55 // pred_check
          %p346 = pneg %p178
        $region70: #{tpu_custom_call.1} parent=55 // pred_check_branch
          %348 = sbr.rel (%p346) target = $region72
        $region71: #{tpu_custom_call.1} parent=55 // pred_region
          %349 = dma.done [#allocation10], 1024
        $region72: #{tpu_custom_call.1} parent=55 // pred_fallthru
          _
        %p350 = pneg %p52
        %p351 = pneg %p49
        %p352 = pneg %p73
        %p353 = pneg %p70
        %p354 = pneg %p94
        %p355 = pneg %p91
        %p356 = pneg %p115
        %p357 = pneg %p112
        %p358 = pneg %p136
        %p359 = pneg %p133
        %p360 = pneg %p157
        %p361 = pneg %p154
        %p362 = pneg %p178
        %p363 = pneg %p175
        %p364 = pneg %p199
        %p365 = pneg %p196
        %p366 = pneg %p220
        %p367 = pneg %p217
        %p368 = pneg %p241
        %p369 = pneg %p238
        %p371 = scmp.eq.s32.totalorder %s29, 0
        // Predicated region
        $region73: #{tpu_custom_call.1} parent=55 // pred_check
          %p372 = pneg %p371
        $region74: #{tpu_custom_call.1} parent=55 // pred_check_branch
          %374 = sbr.rel (%p372) target = $region76
        $region75: #{tpu_custom_call.1} parent=55 // pred_region
          %375 = vst [vmem:[#allocation11] sm:$0xff] 0.0
          %376 = vst [vmem:[#allocation11 + $0x8] sm:$0xff] 0.0
          %377 = vst [vmem:[#allocation11 + $0x10] sm:$0xff] 0.0
          %378 = vst [vmem:[#allocation11 + $0x18] sm:$0xff] 0.0
          %379 = vst [vmem:[#allocation11 + $0x20] sm:$0xff] 0.0
          %380 = vst [vmem:[#allocation11 + $0x28] sm:$0xff] 0.0
          %381 = vst [vmem:[#allocation11 + $0x30] sm:$0xff] 0.0
          %382 = vst [vmem:[#allocation11 + $0x38] sm:$0xff] 0.0
          %383 = vst [vmem:[#allocation11 + $0x40] sm:$0xff] 0.0
          %384 = vst [vmem:[#allocation11 + $0x48] sm:$0xff] 0.0
          %385 = vst [vmem:[#allocation11 + $0x50] sm:$0xff] 0.0
          %386 = vst [vmem:[#allocation11 + $0x58] sm:$0xff] 0.0
          %387 = vst [vmem:[#allocation11 + $0x60] sm:$0xff] 0.0
          %388 = vst [vmem:[#allocation11 + $0x68] sm:$0xff] 0.0
          %389 = vst [vmem:[#allocation11 + $0x70] sm:$0xff] 0.0
          %390 = vst [vmem:[#allocation11 + $0x78] sm:$0xff] 0.0
        $region76: #{tpu_custom_call.1} parent=55 // pred_fallthru
          _
        %v391 = vld [vmem:[#allocation3] sm:$0xff]
        %v392 = vld [vmem:[#allocation3 + $0x8] sm:$0xff]
        %v393 = vld [vmem:[#allocation3 + $0x10] sm:$0xff]
        %v394 = vld [vmem:[#allocation3 + $0x18] sm:$0xff]
        %v395 = vunpack.c.l.s8.bf16 %v391
        %v396 = vunpack.c.h.s8.bf16 %v391
        %v397 = vunpack.c.l.s8.bf16 %v392
        %v398 = vunpack.c.h.s8.bf16 %v392
        %v399 = vunpack.c.l.s8.bf16 %v393
        %v400 = vunpack.c.h.s8.bf16 %v393
        %v401 = vunpack.c.l.s8.bf16 %v394
        %v402 = vunpack.c.h.s8.bf16 %v394
        %s403 = smul.u32 %s29, 128
        %p404 = scmp.eq.s32.totalorder %s28, 0
        // Predicated region
        $region77: #{tpu_custom_call.1} parent=55 // pred_check
          %p405 = pneg %p404
        $region78: #{tpu_custom_call.1} parent=55 // pred_check_branch
          %407 = sbr.rel (%p405) target = $region80
        $region79: #{tpu_custom_call.1} parent=55 // pred_region
          %s408 = sshra.s32 %s403, 3
          %s409 = sand.u32 %s403, 7
          %s410 = smul.addr %s408, 4
          %s411 = scalar_lea.vmem %s2, %s410
          %v412 = vld [vmem:[%s411] sm:$0xf]
          %v413 = vld [vmem:[%s411 + $0x4] sm:$0xf]
          %v414 = vld [vmem:[%s411 + $0x8] sm:$0xf]
          %v415 = vld [vmem:[%s411 + $0xc] sm:$0xf]
          %v416 = vld [vmem:[%s411 + $0x10] sm:$0xf]
          %v417 = vld [vmem:[%s411 + $0x14] sm:$0xf]
          %v418 = vld [vmem:[%s411 + $0x18] sm:$0xf]
          %v419 = vld [vmem:[%s411 + $0x1c] sm:$0xf]
          %v420 = vld [vmem:[%s411 + $0x20] sm:$0xf]
          %v421 = vld [vmem:[%s411 + $0x24] sm:$0xf]
          %v422 = vld [vmem:[%s411 + $0x28] sm:$0xf]
          %v423 = vld [vmem:[%s411 + $0x2c] sm:$0xf]
          %v424 = vld [vmem:[%s411 + $0x30] sm:$0xf]
          %v425 = vld [vmem:[%s411 + $0x34] sm:$0xf]
          %v426 = vld [vmem:[%s411 + $0x38] sm:$0xf]
          %v427 = vld [vmem:[%s411 + $0x3c] sm:$0xf]
          %v428 = vld [vmem:[#allocation6] sm:$0xf]
          %v429 = vld [vmem:[#allocation6 + $0x4] sm:$0xf]
          %v430 = vld [vmem:[#allocation6 + $0x8] sm:$0xf]
          %v431 = vld [vmem:[#allocation6 + $0xc] sm:$0xf]
          %v432 = vld [vmem:[#allocation6 + $0x10] sm:$0xf]
          %v433 = vld [vmem:[#allocation6 + $0x14] sm:$0xf]
          %v434 = vld [vmem:[#allocation6 + $0x18] sm:$0xf]
          %v435 = vld [vmem:[#allocation6 + $0x1c] sm:$0xf]
          %v436 = vld [vmem:[#allocation6 + $0x20] sm:$0xf]
          %v437 = vld [vmem:[#allocation6 + $0x24] sm:$0xf]
          %v438 = vld [vmem:[#allocation6 + $0x28] sm:$0xf]
          %v439 = vld [vmem:[#allocation6 + $0x2c] sm:$0xf]
          %v440 = vld [vmem:[#allocation6 + $0x30] sm:$0xf]
          %v441 = vld [vmem:[#allocation6 + $0x34] sm:$0xf]
          %v442 = vld [vmem:[#allocation6 + $0x38] sm:$0xf]
          %v443 = vld [vmem:[#allocation6 + $0x3c] sm:$0xf]
          %v460 = vunpack.c.l.b16 %v412
          %v461 = vunpack.c.l.b16 %v413
          %v462 = vunpack.c.l.b16 %v414
          %v463 = vunpack.c.l.b16 %v415
          %v464 = vunpack.c.l.b16 %v416
          %v465 = vunpack.c.l.b16 %v417
          %v466 = vunpack.c.l.b16 %v418
          %v467 = vunpack.c.l.b16 %v419
          %v468 = vunpack.c.l.b16 %v420
          %v469 = vunpack.c.l.b16 %v421
          %v470 = vunpack.c.l.b16 %v422
          %v471 = vunpack.c.l.b16 %v423
          %v472 = vunpack.c.l.b16 %v424
          %v473 = vunpack.c.l.b16 %v425
          %v474 = vunpack.c.l.b16 %v426
          %v475 = vunpack.c.l.b16 %v427
          %v476 = vpack.c.b16 %v461, %v460
          %v477 = vpack.c.b16 %v463, %v462
          %v478 = vpack.c.b16 %v465, %v464
          %v479 = vpack.c.b16 %v467, %v466
          %v480 = vpack.c.b16 %v469, %v468
          %v481 = vpack.c.b16 %v471, %v470
          %v482 = vpack.c.b16 %v473, %v472
          %v483 = vpack.c.b16 %v475, %v474
          %v508 = vunpack.c.l.b16 %v428
          %v509 = vunpack.c.l.b16 %v429
          %v510 = vunpack.c.l.b16 %v430
          %v511 = vunpack.c.l.b16 %v431
          %v512 = vunpack.c.l.b16 %v432
          %v513 = vunpack.c.l.b16 %v433
          %v514 = vunpack.c.l.b16 %v434
          %v515 = vunpack.c.l.b16 %v435
          %v516 = vunpack.c.l.b16 %v436
          %v517 = vunpack.c.l.b16 %v437
          %v518 = vunpack.c.l.b16 %v438
          %v519 = vunpack.c.l.b16 %v439
          %v520 = vunpack.c.l.b16 %v440
          %v521 = vunpack.c.l.b16 %v441
          %v522 = vunpack.c.l.b16 %v442
          %v523 = vunpack.c.l.b16 %v443
          %v524 = vpack.c.b16 %v509, %v508
          %v525 = vpack.c.b16 %v511, %v510
          %v526 = vpack.c.b16 %v513, %v512
          %v527 = vpack.c.b16 %v515, %v514
          %v528 = vpack.c.b16 %v517, %v516
          %v529 = vpack.c.b16 %v519, %v518
          %v530 = vpack.c.b16 %v521, %v520
          %v531 = vpack.c.b16 %v523, %v522
          %540 = vmatprep.subr.bf16.mxu0 0
          %541 = vmatpush1.bf16.msra.mxu0 %v524
          %542 = vmatprep.subr.bf16.mxu0 0
          %543 = vmatpush1.bf16.msra.mxu0 %v525
          %544 = vmatprep.subr.bf16.mxu0 0
          %545 = vmatpush1.bf16.msra.mxu0 %v526
          %546 = vmatprep.subr.bf16.mxu0 0
          %547 = vmatpush1.bf16.msra.mxu0 %v527
          %548 = vmatprep.subr.bf16.mxu0 0
          %549 = vmatpush1.bf16.msra.mxu0 %v528
          %550 = vmatprep.subr.bf16.mxu0 0
          %551 = vmatpush1.bf16.msra.mxu0 %v529
          %552 = vmatprep.subr.bf16.mxu0 0
          %553 = vmatpush1.bf16.msra.mxu0 %v530
          %554 = vmatprep.subr.bf16.mxu0 0
          %555 = vmatpush1.bf16.msra.mxu0 %v531
          %556 = vmatprep.subr.bf16.mxu0 0
          %557 = vmatpush1.bf16.msra.mxu0 0
          %558 = vmatprep.subr.bf16.mxu0 0
          %559 = vmatpush1.bf16.msra.mxu0 0
          %560 = vmatprep.subr.bf16.mxu0 0
          %561 = vmatpush1.bf16.msra.mxu0 0
          %562 = vmatprep.subr.bf16.mxu0 0
          %563 = vmatpush1.bf16.msra.mxu0 0
          %564 = vmatprep.subr.bf16.mxu0 0
          %565 = vmatpush1.bf16.msra.mxu0 0
          %566 = vmatprep.subr.bf16.mxu0 0
          %567 = vmatpush1.bf16.msra.mxu0 0
          %568 = vmatprep.subr.bf16.mxu0 0
          %569 = vmatpush1.bf16.msra.mxu0 0
          %570 = vmatprep.subr.bf16.mxu0 0
          %571 = vmatpush1.bf16.msra.mxu0 0
          %572 = vmatprep.mubr.bf16.mxu0 0
          %573 = vmatmul.mubr.bf16.gmra.mrb[0].mxu0 %v476
          %v574 = vpop.f32.mrb[0].mxu0
          %v575 = vadd.f32 0.0, %v574
          %v576 = vpop.f32.mrb[0].mxu0
          %v577 = vpop.f32.mrb[0].mxu0
          %v578 = vadd.f32 0.0, %v577
          %v579 = vpop.f32.mrb[0].mxu0
          %580 = vmatprep.mubr.bf16.mxu0 0
          %581 = vmatmul.mubr.bf16.gmra.mrb[0].mxu0 %v477
          %v582 = vpop.f32.mrb[0].mxu0
          %v583 = vadd.f32 0.0, %v582
          %v584 = vpop.f32.mrb[0].mxu0
          %v585 = vpop.f32.mrb[0].mxu0
          %v586 = vadd.f32 0.0, %v585
          %v587 = vpop.f32.mrb[0].mxu0
          %588 = vmatprep.mubr.bf16.mxu0 0
          %589 = vmatmul.mubr.bf16.gmra.mrb[0].mxu0 %v478
          %v590 = vpop.f32.mrb[0].mxu0
          %v591 = vadd.f32 0.0, %v590
          %v592 = vpop.f32.mrb[0].mxu0
          %v593 = vpop.f32.mrb[0].mxu0
          %v594 = vadd.f32 0.0, %v593
          %v595 = vpop.f32.mrb[0].mxu0
          %596 = vmatprep.mubr.bf16.mxu0 0
          %597 = vmatmul.mubr.bf16.gmra.mrb[0].mxu0 %v479
          %v598 = vpop.f32.mrb[0].mxu0
          %v599 = vadd.f32 0.0, %v598
          %v600 = vpop.f32.mrb[0].mxu0
          %v601 = vpop.f32.mrb[0].mxu0
          %v602 = vadd.f32 0.0, %v601
          %v603 = vpop.f32.mrb[0].mxu0
          %604 = vmatprep.mubr.bf16.mxu0 0
          %605 = vmatmul.mubr.bf16.gmra.mrb[0].mxu0 %v480
          %v606 = vpop.f32.mrb[0].mxu0
          %v607 = vadd.f32 0.0, %v606
          %v608 = vpop.f32.mrb[0].mxu0
          %v609 = vpop.f32.mrb[0].mxu0
          %v610 = vadd.f32 0.0, %v609
          %v611 = vpop.f32.mrb[0].mxu0
          %612 = vmatprep.mubr.bf16.mxu0 0
          %613 = vmatmul.mubr.bf16.gmra.mrb[0].mxu0 %v481
          %v614 = vpop.f32.mrb[0].mxu0
          %v615 = vadd.f32 0.0, %v614
          %v616 = vpop.f32.mrb[0].mxu0
          %v617 = vpop.f32.mrb[0].mxu0
          %v618 = vadd.f32 0.0, %v617
          %v619 = vpop.f32.mrb[0].mxu0
          %620 = vmatprep.mubr.bf16.mxu0 0
          %621 = vmatmul.mubr.bf16.gmra.mrb[0].mxu0 %v482
          %v622 = vpop.f32.mrb[0].mxu0
          %v623 = vadd.f32 0.0, %v622
          %v624 = vpop.f32.mrb[0].mxu0
          %v625 = vpop.f32.mrb[0].mxu0
          %v626 = vadd.f32 0.0, %v625
          %v627 = vpop.f32.mrb[0].mxu0
          %628 = vmatprep.mubr.bf16.mxu0 0
          %629 = vmatmul.mubr.bf16.gmra.mrb[0].mxu0 %v483
          %v630 = vpop.f32.mrb[0].mxu0
          %v631 = vadd.f32 0.0, %v630
          %v632 = vpop.f32.mrb[0].mxu0
          %v633 = vpop.f32.mrb[0].mxu0
          %v634 = vadd.f32 0.0, %v633
          %v635 = vpop.f32.mrb[0].mxu0
          %636 = vdwg.mxu0
          %v637 = vpack.c.bf16 %v578, %v575
          %v638 = vpack.c.bf16 %v586, %v583
          %v639 = vpack.c.bf16 %v594, %v591
          %v640 = vpack.c.bf16 %v602, %v599
          %v641 = vpack.c.bf16 %v610, %v607
          %v642 = vpack.c.bf16 %v618, %v615
          %v643 = vpack.c.bf16 %v626, %v623
          %v644 = vpack.c.bf16 %v634, %v631
          %v645 = vld [vmem:[#allocation11] sm:$0xff]
          %v646 = vld [vmem:[#allocation11 + $0x8] sm:$0xff]
          %v647 = vld [vmem:[#allocation11 + $0x10] sm:$0xff]
          %v648 = vld [vmem:[#allocation11 + $0x18] sm:$0xff]
          %v649 = vld [vmem:[#allocation11 + $0x20] sm:$0xff]
          %v650 = vld [vmem:[#allocation11 + $0x28] sm:$0xff]
          %v651 = vld [vmem:[#allocation11 + $0x30] sm:$0xff]
          %v652 = vld [vmem:[#allocation11 + $0x38] sm:$0xff]
          %v653 = vld [vmem:[#allocation11 + $0x40] sm:$0xff]
          %v654 = vld [vmem:[#allocation11 + $0x48] sm:$0xff]
          %v655 = vld [vmem:[#allocation11 + $0x50] sm:$0xff]
          %v656 = vld [vmem:[#allocation11 + $0x58] sm:$0xff]
          %v657 = vld [vmem:[#allocation11 + $0x60] sm:$0xff]
          %v658 = vld [vmem:[#allocation11 + $0x68] sm:$0xff]
          %v659 = vld [vmem:[#allocation11 + $0x70] sm:$0xff]
          %v660 = vld [vmem:[#allocation11 + $0x78] sm:$0xff]
          %661 = vmatprep.subr.bf16.mxu0 0
          %662 = vmatpush1.bf16.msra.mxu0 %v637
          %663 = vmatprep.subr.bf16.mxu0 0
          %664 = vmatpush1.bf16.msra.mxu0 %v638
          %665 = vmatprep.subr.bf16.mxu0 0
          %666 = vmatpush1.bf16.msra.mxu0 %v639
          %667 = vmatprep.subr.bf16.mxu0 0
          %668 = vmatpush1.bf16.msra.mxu0 %v640
          %669 = vmatprep.subr.bf16.mxu0 0
          %670 = vmatpush1.bf16.msra.mxu0 %v641
          %671 = vmatprep.subr.bf16.mxu0 0
          %672 = vmatpush1.bf16.msra.mxu0 %v642
          %673 = vmatprep.subr.bf16.mxu0 0
          %674 = vmatpush1.bf16.msra.mxu0 %v643
          %675 = vmatprep.subr.bf16.mxu0 0
          %676 = vmatpush1.bf16.msra.mxu0 %v644
          %677 = vmatprep.subr.bf16.mxu0 0
          %678 = vmatpush1.bf16.msra.mxu0 0
          %679 = vmatprep.subr.bf16.mxu0 0
          %680 = vmatpush1.bf16.msra.mxu0 0
          %681 = vmatprep.subr.bf16.mxu0 0
          %682 = vmatpush1.bf16.msra.mxu0 0
          %683 = vmatprep.subr.bf16.mxu0 0
          %684 = vmatpush1.bf16.msra.mxu0 0
          %685 = vmatprep.subr.bf16.mxu0 0
          %686 = vmatpush1.bf16.msra.mxu0 0
          %687 = vmatprep.subr.bf16.mxu0 0
          %688 = vmatpush1.bf16.msra.mxu0 0
          %689 = vmatprep.subr.bf16.mxu0 0
          %690 = vmatpush1.bf16.msra.mxu0 0
          %691 = vmatprep.subr.bf16.mxu0 0
          %692 = vmatpush1.bf16.msra.mxu0 0
          %693 = vmatprep.mubr.bf16.mxu0 0
          %694 = vmatmul.mubr.bf16.gmra.mrb[0].mxu0 %v395
          %v695 = vpop.f32.mrb[0].mxu0
          %v696 = vadd.f32 0.0, %v695
          %v697 = vpop.f32.mrb[0].mxu0
          %v698 = vpop.f32.mrb[0].mxu0
          %v699 = vadd.f32 0.0, %v698
          %v700 = vpop.f32.mrb[0].mxu0
          %701 = vmatprep.mubr.bf16.mxu0 0
          %702 = vmatmul.mubr.bf16.gmra.mrb[0].mxu0 %v396
          %v703 = vpop.f32.mrb[0].mxu0
          %v704 = vadd.f32 0.0, %v703
          %v705 = vpop.f32.mrb[0].mxu0
          %v706 = vpop.f32.mrb[0].mxu0
          %v707 = vadd.f32 0.0, %v706
          %v708 = vpop.f32.mrb[0].mxu0
          %709 = vmatprep.mubr.bf16.mxu0 0
          %710 = vmatmul.mubr.bf16.gmra.mrb[0].mxu0 %v397
          %v711 = vpop.f32.mrb[0].mxu0
          %v712 = vadd.f32 0.0, %v711
          %v713 = vpop.f32.mrb[0].mxu0
          %v714 = vpop.f32.mrb[0].mxu0
          %v715 = vadd.f32 0.0, %v714
          %v716 = vpop.f32.mrb[0].mxu0
          %717 = vmatprep.mubr.bf16.mxu0 0
          %718 = vmatmul.mubr.bf16.gmra.mrb[0].mxu0 %v398
          %v719 = vpop.f32.mrb[0].mxu0
          %v720 = vadd.f32 0.0, %v719
          %v721 = vpop.f32.mrb[0].mxu0
          %v722 = vpop.f32.mrb[0].mxu0
          %v723 = vadd.f32 0.0, %v722
          %v724 = vpop.f32.mrb[0].mxu0
          %725 = vmatprep.mubr.bf16.mxu0 0
          %726 = vmatmul.mubr.bf16.gmra.mrb[0].mxu0 %v399
          %v727 = vpop.f32.mrb[0].mxu0
          %v728 = vadd.f32 0.0, %v727
          %v729 = vpop.f32.mrb[0].mxu0
          %v730 = vpop.f32.mrb[0].mxu0
          %v731 = vadd.f32 0.0, %v730
          %v732 = vpop.f32.mrb[0].mxu0
          %733 = vmatprep.mubr.bf16.mxu0 0
          %734 = vmatmul.mubr.bf16.gmra.mrb[0].mxu0 %v400
          %v735 = vpop.f32.mrb[0].mxu0
          %v736 = vadd.f32 0.0, %v735
          %v737 = vpop.f32.mrb[0].mxu0
          %v738 = vpop.f32.mrb[0].mxu0
          %v739 = vadd.f32 0.0, %v738
          %v740 = vpop.f32.mrb[0].mxu0
          %741 = vmatprep.mubr.bf16.mxu0 0
          %742 = vmatmul.mubr.bf16.gmra.mrb[0].mxu0 %v401
          %v743 = vpop.f32.mrb[0].mxu0
          %v744 = vadd.f32 0.0, %v743
          %v745 = vpop.f32.mrb[0].mxu0
          %v746 = vpop.f32.mrb[0].mxu0
          %v747 = vadd.f32 0.0, %v746
          %v748 = vpop.f32.mrb[0].mxu0
          %749 = vmatprep.mubr.bf16.mxu0 0
          %750 = vmatmul.mubr.bf16.gmra.mrb[0].mxu0 %v402
          %v751 = vpop.f32.mrb[0].mxu0
          %v752 = vadd.f32 0.0, %v751
          %v753 = vpop.f32.mrb[0].mxu0
          %v754 = vpop.f32.mrb[0].mxu0
          %v755 = vadd.f32 0.0, %v754
          %v756 = vpop.f32.mrb[0].mxu0
          %757 = vdwg.mxu0
          %v758 = vadd.f32 %v645, %v696
          %v759 = vadd.f32 %v646, %v699
          %v760 = vadd.f32 %v647, %v704
          %v761 = vadd.f32 %v648, %v707
          %v762 = vadd.f32 %v649, %v712
          %v763 = vadd.f32 %v650, %v715
          %v764 = vadd.f32 %v651, %v720
          %v765 = vadd.f32 %v652, %v723
          %v766 = vadd.f32 %v653, %v728
          %v767 = vadd.f32 %v654, %v731
          %v768 = vadd.f32 %v655, %v736
          %v769 = vadd.f32 %v656, %v739
          %v770 = vadd.f32 %v657, %v744
          %v771 = vadd.f32 %v658, %v747
          %v772 = vadd.f32 %v659, %v752
          %v773 = vadd.f32 %v660, %v755
          %774 = vst [vmem:[#allocation11] sm:$0xff] %v758
          %775 = vst [vmem:[#allocation11 + $0x8] sm:$0xff] %v759
          %776 = vst [vmem:[#allocation11 + $0x10] sm:$0xff] %v760
          %777 = vst [vmem:[#allocation11 + $0x18] sm:$0xff] %v761
          %778 = vst [vmem:[#allocation11 + $0x20] sm:$0xff] %v762
          %779 = vst [vmem:[#allocation11 + $0x28] sm:$0xff] %v763
          %780 = vst [vmem:[#allocation11 + $0x30] sm:$0xff] %v764
          %781 = vst [vmem:[#allocation11 + $0x38] sm:$0xff] %v765
          %782 = vst [vmem:[#allocation11 + $0x40] sm:$0xff] %v766
          %783 = vst [vmem:[#allocation11 + $0x48] sm:$0xff] %v767
          %784 = vst [vmem:[#allocation11 + $0x50] sm:$0xff] %v768
          %785 = vst [vmem:[#allocation11 + $0x58] sm:$0xff] %v769
          %786 = vst [vmem:[#allocation11 + $0x60] sm:$0xff] %v770
          %787 = vst [vmem:[#allocation11 + $0x68] sm:$0xff] %v771
          %788 = vst [vmem:[#allocation11 + $0x70] sm:$0xff] %v772
          %789 = vst [vmem:[#allocation11 + $0x78] sm:$0xff] %v773
        $region80: #{tpu_custom_call.1} parent=55 // pred_fallthru
          _
        %p790 = scmp.eq.s32.totalorder %s28, 1
        // Predicated region
        $region81: #{tpu_custom_call.1} parent=55 // pred_check
          %p791 = pneg %p790
        $region82: #{tpu_custom_call.1} parent=55 // pred_check_branch
          %793 = sbr.rel (%p791) target = $region84
        $region83: #{tpu_custom_call.1} parent=55 // pred_region
          %s794 = sshra.s32 %s403, 4
          %s795 = sand.u32 %s403, 15
          %s796 = smul.addr %s794, 8
          %s797 = scalar_lea.vmem [#allocation2], %s796
          %v798 = vld [vmem:[%s797] sm:$0xff]
          %v799 = vld [vmem:[%s797 + $0x8] sm:$0xff]
          %v800 = vld [vmem:[%s797 + $0x10] sm:$0xff]
          %v801 = vld [vmem:[%s797 + $0x18] sm:$0xff]
          %v802 = vld [vmem:[%s797 + $0x20] sm:$0xff]
          %v803 = vld [vmem:[%s797 + $0x28] sm:$0xff]
          %v804 = vld [vmem:[%s797 + $0x30] sm:$0xff]
          %v805 = vld [vmem:[%s797 + $0x38] sm:$0xff]
          %v806 = vld [vmem:[#allocation9] sm:$0xf]
          %v807 = vld [vmem:[#allocation9 + $0x4] sm:$0xf]
          %v808 = vld [vmem:[#allocation9 + $0x8] sm:$0xf]
          %v809 = vld [vmem:[#allocation9 + $0xc] sm:$0xf]
          %v810 = vld [vmem:[#allocation9 + $0x10] sm:$0xf]
          %v811 = vld [vmem:[#allocation9 + $0x14] sm:$0xf]
          %v812 = vld [vmem:[#allocation9 + $0x18] sm:$0xf]
          %v813 = vld [vmem:[#allocation9 + $0x1c] sm:$0xf]
          %v814 = vld [vmem:[#allocation9 + $0x20] sm:$0xf]
          %v815 = vld [vmem:[#allocation9 + $0x24] sm:$0xf]
          %v816 = vld [vmem:[#allocation9 + $0x28] sm:$0xf]
          %v817 = vld [vmem:[#allocation9 + $0x2c] sm:$0xf]
          %v818 = vld [vmem:[#allocation9 + $0x30] sm:$0xf]
          %v819 = vld [vmem:[#allocation9 + $0x34] sm:$0xf]
          %v820 = vld [vmem:[#allocation9 + $0x38] sm:$0xf]
          %v821 = vld [vmem:[#allocation9 + $0x3c] sm:$0xf]
          %v838 = vunpack.c.l.b16 %v806
          %v839 = vunpack.c.l.b16 %v807
          %v840 = vunpack.c.l.b16 %v808
          %v841 = vunpack.c.l.b16 %v809
          %v842 = vunpack.c.l.b16 %v810
          %v843 = vunpack.c.l.b16 %v811
          %v844 = vunpack.c.l.b16 %v812
          %v845 = vunpack.c.l.b16 %v813
          %v846 = vunpack.c.l.b16 %v814
          %v847 = vunpack.c.l.b16 %v815
          %v848 = vunpack.c.l.b16 %v816
          %v849 = vunpack.c.l.b16 %v817
          %v850 = vunpack.c.l.b16 %v818
          %v851 = vunpack.c.l.b16 %v819
          %v852 = vunpack.c.l.b16 %v820
          %v853 = vunpack.c.l.b16 %v821
          %v854 = vpack.c.b16 %v839, %v838
          %v855 = vpack.c.b16 %v841, %v840
          %v856 = vpack.c.b16 %v843, %v842
          %v857 = vpack.c.b16 %v845, %v844
          %v858 = vpack.c.b16 %v847, %v846
          %v859 = vpack.c.b16 %v849, %v848
          %v860 = vpack.c.b16 %v851, %v850
          %v861 = vpack.c.b16 %v853, %v852
          %870 = vmatprep.subr.bf16.mxu0 0
          %871 = vmatpush1.bf16.msra.mxu0 %v854
          %872 = vmatprep.subr.bf16.mxu0 0
          %873 = vmatpush1.bf16.msra.mxu0 %v855
          %874 = vmatprep.subr.bf16.mxu0 0
          %875 = vmatpush1.bf16.msra.mxu0 %v856
          %876 = vmatprep.subr.bf16.mxu0 0
          %877 = vmatpush1.bf16.msra.mxu0 %v857
          %878 = vmatprep.subr.bf16.mxu0 0
          %879 = vmatpush1.bf16.msra.mxu0 %v858
          %880 = vmatprep.subr.bf16.mxu0 0
          %881 = vmatpush1.bf16.msra.mxu0 %v859
          %882 = vmatprep.subr.bf16.mxu0 0
          %883 = vmatpush1.bf16.msra.mxu0 %v860
          %884 = vmatprep.subr.bf16.mxu0 0
          %885 = vmatpush1.bf16.msra.mxu0 %v861
          %886 = vmatprep.subr.bf16.mxu0 0
          %887 = vmatpush1.bf16.msra.mxu0 0
          %888 = vmatprep.subr.bf16.mxu0 0
          %889 = vmatpush1.bf16.msra.mxu0 0
          %890 = vmatprep.subr.bf16.mxu0 0
          %891 = vmatpush1.bf16.msra.mxu0 0
          %892 = vmatprep.subr.bf16.mxu0 0
          %893 = vmatpush1.bf16.msra.mxu0 0
          %894 = vmatprep.subr.bf16.mxu0 0
          %895 = vmatpush1.bf16.msra.mxu0 0
          %896 = vmatprep.subr.bf16.mxu0 0
          %897 = vmatpush1.bf16.msra.mxu0 0
          %898 = vmatprep.subr.bf16.mxu0 0
          %899 = vmatpush1.bf16.msra.mxu0 0
          %900 = vmatprep.subr.bf16.mxu0 0
          %901 = vmatpush1.bf16.msra.mxu0 0
          %902 = vmatprep.mubr.bf16.mxu0 0
          %903 = vmatmul.mubr.bf16.gmra.mrb[0].mxu0 %v798
          %v904 = vpop.f32.mrb[0].mxu0
          %v905 = vadd.f32 0.0, %v904
          %v906 = vpop.f32.mrb[0].mxu0
          %v907 = vpop.f32.mrb[0].mxu0
          %v908 = vadd.f32 0.0, %v907
          %v909 = vpop.f32.mrb[0].mxu0
          %910 = vmatprep.mubr.bf16.mxu0 0
          %911 = vmatmul.mubr.bf16.gmra.mrb[0].mxu0 %v799
          %v912 = vpop.f32.mrb[0].mxu0
          %v913 = vadd.f32 0.0, %v912
          %v914 = vpop.f32.mrb[0].mxu0
          %v915 = vpop.f32.mrb[0].mxu0
          %v916 = vadd.f32 0.0, %v915
          %v917 = vpop.f32.mrb[0].mxu0
          %918 = vmatprep.mubr.bf16.mxu0 0
          %919 = vmatmul.mubr.bf16.gmra.mrb[0].mxu0 %v800
          %v920 = vpop.f32.mrb[0].mxu0
          %v921 = vadd.f32 0.0, %v920
          %v922 = vpop.f32.mrb[0].mxu0
          %v923 = vpop.f32.mrb[0].mxu0
          %v924 = vadd.f32 0.0, %v923
          %v925 = vpop.f32.mrb[0].mxu0
          %926 = vmatprep.mubr.bf16.mxu0 0
          %927 = vmatmul.mubr.bf16.gmra.mrb[0].mxu0 %v801
          %v928 = vpop.f32.mrb[0].mxu0
          %v929 = vadd.f32 0.0, %v928
          %v930 = vpop.f32.mrb[0].mxu0
          %v931 = vpop.f32.mrb[0].mxu0
          %v932 = vadd.f32 0.0, %v931
          %v933 = vpop.f32.mrb[0].mxu0
          %934 = vmatprep.mubr.bf16.mxu0 0
          %935 = vmatmul.mubr.bf16.gmra.mrb[0].mxu0 %v802
          %v936 = vpop.f32.mrb[0].mxu0
          %v937 = vadd.f32 0.0, %v936
          %v938 = vpop.f32.mrb[0].mxu0
          %v939 = vpop.f32.mrb[0].mxu0
          %v940 = vadd.f32 0.0, %v939
          %v941 = vpop.f32.mrb[0].mxu0
          %942 = vmatprep.mubr.bf16.mxu0 0
          %943 = vmatmul.mubr.bf16.gmra.mrb[0].mxu0 %v803
          %v944 = vpop.f32.mrb[0].mxu0
          %v945 = vadd.f32 0.0, %v944
          %v946 = vpop.f32.mrb[0].mxu0
          %v947 = vpop.f32.mrb[0].mxu0
          %v948 = vadd.f32 0.0, %v947
          %v949 = vpop.f32.mrb[0].mxu0
          %950 = vmatprep.mubr.bf16.mxu0 0
          %951 = vmatmul.mubr.bf16.gmra.mrb[0].mxu0 %v804
          %v952 = vpop.f32.mrb[0].mxu0
          %v953 = vadd.f32 0.0, %v952
          %v954 = vpop.f32.mrb[0].mxu0
          %v955 = vpop.f32.mrb[0].mxu0
          %v956 = vadd.f32 0.0, %v955
          %v957 = vpop.f32.mrb[0].mxu0
          %958 = vmatprep.mubr.bf16.mxu0 0
          %959 = vmatmul.mubr.bf16.gmra.mrb[0].mxu0 %v805
          %v960 = vpop.f32.mrb[0].mxu0
          %v961 = vadd.f32 0.0, %v960
          %v962 = vpop.f32.mrb[0].mxu0
          %v963 = vpop.f32.mrb[0].mxu0
          %v964 = vadd.f32 0.0, %v963
          %v965 = vpop.f32.mrb[0].mxu0
          %966 = vdwg.mxu0
          %v967 = vpack.c.bf16 %v908, %v905
          %v968 = vpack.c.bf16 %v916, %v913
          %v969 = vpack.c.bf16 %v924, %v921
          %v970 = vpack.c.bf16 %v932, %v929
          %v971 = vpack.c.bf16 %v940, %v937
          %v972 = vpack.c.bf16 %v948, %v945
          %v973 = vpack.c.bf16 %v956, %v953
          %v974 = vpack.c.bf16 %v964, %v961
          %v975 = vld [vmem:[#allocation11] sm:$0xff]
          %v976 = vld [vmem:[#allocation11 + $0x8] sm:$0xff]
          %v977 = vld [vmem:[#allocation11 + $0x10] sm:$0xff]
          %v978 = vld [vmem:[#allocation11 + $0x18] sm:$0xff]
          %v979 = vld [vmem:[#allocation11 + $0x20] sm:$0xff]
          %v980 = vld [vmem:[#allocation11 + $0x28] sm:$0xff]
          %v981 = vld [vmem:[#allocation11 + $0x30] sm:$0xff]
          %v982 = vld [vmem:[#allocation11 + $0x38] sm:$0xff]
          %v983 = vld [vmem:[#allocation11 + $0x40] sm:$0xff]
          %v984 = vld [vmem:[#allocation11 + $0x48] sm:$0xff]
          %v985 = vld [vmem:[#allocation11 + $0x50] sm:$0xff]
          %v986 = vld [vmem:[#allocation11 + $0x58] sm:$0xff]
          %v987 = vld [vmem:[#allocation11 + $0x60] sm:$0xff]
          %v988 = vld [vmem:[#allocation11 + $0x68] sm:$0xff]
          %v989 = vld [vmem:[#allocation11 + $0x70] sm:$0xff]
          %v990 = vld [vmem:[#allocation11 + $0x78] sm:$0xff]
          %991 = vmatprep.subr.bf16.mxu0 0
          %992 = vmatpush1.bf16.msra.mxu0 %v967
          %993 = vmatprep.subr.bf16.mxu0 0
          %994 = vmatpush1.bf16.msra.mxu0 %v968
          %995 = vmatprep.subr.bf16.mxu0 0
          %996 = vmatpush1.bf16.msra.mxu0 %v969
          %997 = vmatprep.subr.bf16.mxu0 0
          %998 = vmatpush1.bf16.msra.mxu0 %v970
          %999 = vmatprep.subr.bf16.mxu0 0
          %1000 = vmatpush1.bf16.msra.mxu0 %v971
          %1001 = vmatprep.subr.bf16.mxu0 0
          %1002 = vmatpush1.bf16.msra.mxu0 %v972
          %1003 = vmatprep.subr.bf16.mxu0 0
          %1004 = vmatpush1.bf16.msra.mxu0 %v973
          %1005 = vmatprep.subr.bf16.mxu0 0
          %1006 = vmatpush1.bf16.msra.mxu0 %v974
          %1007 = vmatprep.subr.bf16.mxu0 0
          %1008 = vmatpush1.bf16.msra.mxu0 0
          %1009 = vmatprep.subr.bf16.mxu0 0
          %1010 = vmatpush1.bf16.msra.mxu0 0
          %1011 = vmatprep.subr.bf16.mxu0 0
          %1012 = vmatpush1.bf16.msra.mxu0 0
          %1013 = vmatprep.subr.bf16.mxu0 0
          %1014 = vmatpush1.bf16.msra.mxu0 0
          %1015 = vmatprep.subr.bf16.mxu0 0
          %1016 = vmatpush1.bf16.msra.mxu0 0
          %1017 = vmatprep.subr.bf16.mxu0 0
          %1018 = vmatpush1.bf16.msra.mxu0 0
          %1019 = vmatprep.subr.bf16.mxu0 0
          %1020 = vmatpush1.bf16.msra.mxu0 0
          %1021 = vmatprep.subr.bf16.mxu0 0
          %1022 = vmatpush1.bf16.msra.mxu0 0
          %1023 = vmatprep.mubr.bf16.mxu0 0
          %1024 = vmatmul.mubr.bf16.gmra.mrb[0].mxu0 %v395
          %v1025 = vpop.f32.mrb[0].mxu0
          %v1026 = vadd.f32 0.0, %v1025
          %v1027 = vpop.f32.mrb[0].mxu0
          %v1028 = vpop.f32.mrb[0].mxu0
          %v1029 = vadd.f32 0.0, %v1028
          %v1030 = vpop.f32.mrb[0].mxu0
          %1031 = vmatprep.mubr.bf16.mxu0 0
          %1032 = vmatmul.mubr.bf16.gmra.mrb[0].mxu0 %v396
          %v1033 = vpop.f32.mrb[0].mxu0
          %v1034 = vadd.f32 0.0, %v1033
          %v1035 = vpop.f32.mrb[0].mxu0
          %v1036 = vpop.f32.mrb[0].mxu0
          %v1037 = vadd.f32 0.0, %v1036
          %v1038 = vpop.f32.mrb[0].mxu0
          %1039 = vmatprep.mubr.bf16.mxu0 0
          %1040 = vmatmul.mubr.bf16.gmra.mrb[0].mxu0 %v397
          %v1041 = vpop.f32.mrb[0].mxu0
          %v1042 = vadd.f32 0.0, %v1041
          %v1043 = vpop.f32.mrb[0].mxu0
          %v1044 = vpop.f32.mrb[0].mxu0
          %v1045 = vadd.f32 0.0, %v1044
          %v1046 = vpop.f32.mrb[0].mxu0
          %1047 = vmatprep.mubr.bf16.mxu0 0
          %1048 = vmatmul.mubr.bf16.gmra.mrb[0].mxu0 %v398
          %v1049 = vpop.f32.mrb[0].mxu0
          %v1050 = vadd.f32 0.0, %v1049
          %v1051 = vpop.f32.mrb[0].mxu0
          %v1052 = vpop.f32.mrb[0].mxu0
          %v1053 = vadd.f32 0.0, %v1052
          %v1054 = vpop.f32.mrb[0].mxu0
          %1055 = vmatprep.mubr.bf16.mxu0 0
          %1056 = vmatmul.mubr.bf16.gmra.mrb[0].mxu0 %v399
          %v1057 = vpop.f32.mrb[0].mxu0
          %v1058 = vadd.f32 0.0, %v1057
          %v1059 = vpop.f32.mrb[0].mxu0
          %v1060 = vpop.f32.mrb[0].mxu0
          %v1061 = vadd.f32 0.0, %v1060
          %v1062 = vpop.f32.mrb[0].mxu0
          %1063 = vmatprep.mubr.bf16.mxu0 0
          %1064 = vmatmul.mubr.bf16.gmra.mrb[0].mxu0 %v400
          %v1065 = vpop.f32.mrb[0].mxu0
          %v1066 = vadd.f32 0.0, %v1065
          %v1067 = vpop.f32.mrb[0].mxu0
          %v1068 = vpop.f32.mrb[0].mxu0
          %v1069 = vadd.f32 0.0, %v1068
          %v1070 = vpop.f32.mrb[0].mxu0
          %1071 = vmatprep.mubr.bf16.mxu0 0
          %1072 = vmatmul.mubr.bf16.gmra.mrb[0].mxu0 %v401
          %v1073 = vpop.f32.mrb[0].mxu0
          %v1074 = vadd.f32 0.0, %v1073
          %v1075 = vpop.f32.mrb[0].mxu0
          %v1076 = vpop.f32.mrb[0].mxu0
          %v1077 = vadd.f32 0.0, %v1076
          %v1078 = vpop.f32.mrb[0].mxu0
          %1079 = vmatprep.mubr.bf16.mxu0 0
          %1080 = vmatmul.mubr.bf16.gmra.mrb[0].mxu0 %v402
          %v1081 = vpop.f32.mrb[0].mxu0
          %v1082 = vadd.f32 0.0, %v1081
          %v1083 = vpop.f32.mrb[0].mxu0
          %v1084 = vpop.f32.mrb[0].mxu0
          %v1085 = vadd.f32 0.0, %v1084
          %v1086 = vpop.f32.mrb[0].mxu0
          %1087 = vdwg.mxu0
          %v1088 = vadd.f32 %v975, %v1026
          %v1089 = vadd.f32 %v976, %v1029
          %v1090 = vadd.f32 %v977, %v1034
          %v1091 = vadd.f32 %v978, %v1037
          %v1092 = vadd.f32 %v979, %v1042
          %v1093 = vadd.f32 %v980, %v1045
          %v1094 = vadd.f32 %v981, %v1050
          %v1095 = vadd.f32 %v982, %v1053
          %v1096 = vadd.f32 %v983, %v1058
          %v1097 = vadd.f32 %v984, %v1061
          %v1098 = vadd.f32 %v985, %v1066
          %v1099 = vadd.f32 %v986, %v1069
          %v1100 = vadd.f32 %v987, %v1074
          %v1101 = vadd.f32 %v988, %v1077
          %v1102 = vadd.f32 %v989, %v1082
          %v1103 = vadd.f32 %v990, %v1085
          %1104 = vst [vmem:[#allocation11] sm:$0xff] %v1088
          %1105 = vst [vmem:[#allocation11 + $0x8] sm:$0xff] %v1089
          %1106 = vst [vmem:[#allocation11 + $0x10] sm:$0xff] %v1090
          %1107 = vst [vmem:[#allocation11 + $0x18] sm:$0xff] %v1091
          %1108 = vst [vmem:[#allocation11 + $0x20] sm:$0xff] %v1092
          %1109 = vst [vmem:[#allocation11 + $0x28] sm:$0xff] %v1093
          %1110 = vst [vmem:[#allocation11 + $0x30] sm:$0xff] %v1094
          %1111 = vst [vmem:[#allocation11 + $0x38] sm:$0xff] %v1095
          %1112 = vst [vmem:[#allocation11 + $0x40] sm:$0xff] %v1096
          %1113 = vst [vmem:[#allocation11 + $0x48] sm:$0xff] %v1097
          %1114 = vst [vmem:[#allocation11 + $0x50] sm:$0xff] %v1098
          %1115 = vst [vmem:[#allocation11 + $0x58] sm:$0xff] %v1099
          %1116 = vst [vmem:[#allocation11 + $0x60] sm:$0xff] %v1100
          %1117 = vst [vmem:[#allocation11 + $0x68] sm:$0xff] %v1101
          %1118 = vst [vmem:[#allocation11 + $0x70] sm:$0xff] %v1102
          %1119 = vst [vmem:[#allocation11 + $0x78] sm:$0xff] %v1103
        $region84: #{tpu_custom_call.1} parent=55 // pred_fallthru
          _
        // Predicated region
        $region85: #{tpu_custom_call.1} parent=55 // pred_check
          %p1120 = pneg %p371
        $region86: #{tpu_custom_call.1} parent=55 // pred_check_branch
          %1122 = sbr.rel (%p1120) target = $region88
        $region87: #{tpu_custom_call.1} parent=55 // pred_region
          // Predicated region
          $region89: #{tpu_custom_call.1} parent=87 // pred_check
            %p1123 = pneg %p404
          $region90: #{tpu_custom_call.1} parent=87 // pred_check_branch
            %1125 = sbr.rel (%p1123) target = $region92
          $region91: #{tpu_custom_call.1} parent=87 // pred_region
            %v1126 = vld [vmem:[#allocation11] sm:$0xff]
            %v1127 = vld [vmem:[#allocation11 + $0x8] sm:$0xff]
            %v1128 = vld [vmem:[#allocation11 + $0x10] sm:$0xff]
            %v1129 = vld [vmem:[#allocation11 + $0x18] sm:$0xff]
            %v1130 = vld [vmem:[#allocation11 + $0x20] sm:$0xff]
            %v1131 = vld [vmem:[#allocation11 + $0x28] sm:$0xff]
            %v1132 = vld [vmem:[#allocation11 + $0x30] sm:$0xff]
            %v1133 = vld [vmem:[#allocation11 + $0x38] sm:$0xff]
            %v1134 = vld [vmem:[#allocation11 + $0x40] sm:$0xff]
            %v1135 = vld [vmem:[#allocation11 + $0x48] sm:$0xff]
            %v1136 = vld [vmem:[#allocation11 + $0x50] sm:$0xff]
            %v1137 = vld [vmem:[#allocation11 + $0x58] sm:$0xff]
            %v1138 = vld [vmem:[#allocation11 + $0x60] sm:$0xff]
            %v1139 = vld [vmem:[#allocation11 + $0x68] sm:$0xff]
            %v1140 = vld [vmem:[#allocation11 + $0x70] sm:$0xff]
            %v1141 = vld [vmem:[#allocation11 + $0x78] sm:$0xff]
            %v1142 = vld [vmem:[%s1] sm:$0xff]
            %v1143 = vld [vmem:[%s1 + $0x8] sm:$0xff]
            %v1144 = vld [vmem:[%s1 + $0x10] sm:$0xff]
            %v1145 = vld [vmem:[%s1 + $0x18] sm:$0xff]
            %v1146 = vld [vmem:[%s1 + $0x20] sm:$0xff]
            %v1147 = vld [vmem:[%s1 + $0x28] sm:$0xff]
            %v1148 = vld [vmem:[%s1 + $0x30] sm:$0xff]
            %v1149 = vld [vmem:[%s1 + $0x38] sm:$0xff]
            %v1150 = vld [vmem:[%s1 + $0x40] sm:$0xff]
            %v1151 = vld [vmem:[%s1 + $0x48] sm:$0xff]
            %v1152 = vld [vmem:[%s1 + $0x50] sm:$0xff]
            %v1153 = vld [vmem:[%s1 + $0x58] sm:$0xff]
            %v1154 = vld [vmem:[%s1 + $0x60] sm:$0xff]
            %v1155 = vld [vmem:[%s1 + $0x68] sm:$0xff]
            %v1156 = vld [vmem:[%s1 + $0x70] sm:$0xff]
            %v1157 = vld [vmem:[%s1 + $0x78] sm:$0xff]
            %1159 = vset.pattern.permute.xlu0 0
            %1160 = vperm.xlu0 %1159, %v1142
            %v1161 = vpop.permute.xlu0 %1160
            %1164 = vset.pattern.permute.xlu0 0
            %1165 = vperm.xlu0 %1164, %v1143
            %v1166 = vpop.permute.xlu0 %1165
            %1169 = vset.pattern.permute.xlu0 0
            %1170 = vperm.xlu0 %1169, %v1144
            %v1171 = vpop.permute.xlu0 %1170
            %1174 = vset.pattern.permute.xlu0 0
            %1175 = vperm.xlu0 %1174, %v1145
            %v1176 = vpop.permute.xlu0 %1175
            %1179 = vset.pattern.permute.xlu0 0
            %1180 = vperm.xlu0 %1179, %v1146
            %v1181 = vpop.permute.xlu0 %1180
            %1184 = vset.pattern.permute.xlu0 0
            %1185 = vperm.xlu0 %1184, %v1147
            %v1186 = vpop.permute.xlu0 %1185
            %1189 = vset.pattern.permute.xlu0 0
            %1190 = vperm.xlu0 %1189, %v1148
            %v1191 = vpop.permute.xlu0 %1190
            %1194 = vset.pattern.permute.xlu0 0
            %1195 = vperm.xlu0 %1194, %v1149
            %v1196 = vpop.permute.xlu0 %1195
            %1199 = vset.pattern.permute.xlu0 0
            %1200 = vperm.xlu0 %1199, %v1150
            %v1201 = vpop.permute.xlu0 %1200
            %1204 = vset.pattern.permute.xlu0 0
            %1205 = vperm.xlu0 %1204, %v1151
            %v1206 = vpop.permute.xlu0 %1205
            %1209 = vset.pattern.permute.xlu0 0
            %1210 = vperm.xlu0 %1209, %v1152
            %v1211 = vpop.permute.xlu0 %1210
            %1214 = vset.pattern.permute.xlu0 0
            %1215 = vperm.xlu0 %1214, %v1153
            %v1216 = vpop.permute.xlu0 %1215
            %1219 = vset.pattern.permute.xlu0 0
            %1220 = vperm.xlu0 %1219, %v1154
            %v1221 = vpop.permute.xlu0 %1220
            %1224 = vset.pattern.permute.xlu0 0
            %1225 = vperm.xlu0 %1224, %v1155
            %v1226 = vpop.permute.xlu0 %1225
            %1229 = vset.pattern.permute.xlu0 0
            %1230 = vperm.xlu0 %1229, %v1156
            %v1231 = vpop.permute.xlu0 %1230
            %1234 = vset.pattern.permute.xlu0 0
            %1235 = vperm.xlu0 %1234, %v1157
            %v1236 = vpop.permute.xlu0 %1235
            %v1238 = vmul.f32 %v1126, %v1161
            %v1239 = vmul.f32 %v1127, %v1166
            %v1240 = vmul.f32 %v1128, %v1171
            %v1241 = vmul.f32 %v1129, %v1176
            %v1242 = vmul.f32 %v1130, %v1181
            %v1243 = vmul.f32 %v1131, %v1186
            %v1244 = vmul.f32 %v1132, %v1191
            %v1245 = vmul.f32 %v1133, %v1196
            %v1246 = vmul.f32 %v1134, %v1201
            %v1247 = vmul.f32 %v1135, %v1206
            %v1248 = vmul.f32 %v1136, %v1211
            %v1249 = vmul.f32 %v1137, %v1216
            %v1250 = vmul.f32 %v1138, %v1221
            %v1251 = vmul.f32 %v1139, %v1226
            %v1252 = vmul.f32 %v1140, %v1231
            %v1253 = vmul.f32 %v1141, %v1236
            %v1254 = vld [vmem:[%s2] sm:$0xf]
            %v1255 = vld [vmem:[%s2 + $0x4] sm:$0xf]
            %v1256 = vld [vmem:[%s2 + $0x8] sm:$0xf]
            %v1257 = vld [vmem:[%s2 + $0xc] sm:$0xf]
            %v1258 = vld [vmem:[%s2 + $0x10] sm:$0xf]
            %v1259 = vld [vmem:[%s2 + $0x14] sm:$0xf]
            %v1260 = vld [vmem:[%s2 + $0x18] sm:$0xf]
            %v1261 = vld [vmem:[%s2 + $0x1c] sm:$0xf]
            %v1262 = vld [vmem:[%s2 + $0x20] sm:$0xf]
            %v1263 = vld [vmem:[%s2 + $0x24] sm:$0xf]
            %v1264 = vld [vmem:[%s2 + $0x28] sm:$0xf]
            %v1265 = vld [vmem:[%s2 + $0x2c] sm:$0xf]
            %v1266 = vld [vmem:[%s2 + $0x30] sm:$0xf]
            %v1267 = vld [vmem:[%s2 + $0x34] sm:$0xf]
            %v1268 = vld [vmem:[%s2 + $0x38] sm:$0xf]
            %v1269 = vld [vmem:[%s2 + $0x3c] sm:$0xf]
            %v1270 = vld [vmem:[%s3] sm:$0xf]
            %v1271 = vld [vmem:[%s3 + $0x4] sm:$0xf]
            %v1272 = vld [vmem:[%s3 + $0x8] sm:$0xf]
            %v1273 = vld [vmem:[%s3 + $0xc] sm:$0xf]
            %v1274 = vld [vmem:[%s3 + $0x10] sm:$0xf]
            %v1275 = vld [vmem:[%s3 + $0x14] sm:$0xf]
            %v1276 = vld [vmem:[%s3 + $0x18] sm:$0xf]
            %v1277 = vld [vmem:[%s3 + $0x1c] sm:$0xf]
            %v1278 = vld [vmem:[%s3 + $0x20] sm:$0xf]
            %v1279 = vld [vmem:[%s3 + $0x24] sm:$0xf]
            %v1280 = vld [vmem:[%s3 + $0x28] sm:$0xf]
            %v1281 = vld [vmem:[%s3 + $0x2c] sm:$0xf]
            %v1282 = vld [vmem:[%s3 + $0x30] sm:$0xf]
            %v1283 = vld [vmem:[%s3 + $0x34] sm:$0xf]
            %v1284 = vld [vmem:[%s3 + $0x38] sm:$0xf]
            %v1285 = vld [vmem:[%s3 + $0x3c] sm:$0xf]
            %v1302 = vunpack.c.l.b16 %v1254
            %v1303 = vunpack.c.l.b16 %v1255
            %v1304 = vunpack.c.l.b16 %v1256
            %v1305 = vunpack.c.l.b16 %v1257
            %v1306 = vunpack.c.l.b16 %v1258
            %v1307 = vunpack.c.l.b16 %v1259
            %v1308 = vunpack.c.l.b16 %v1260
            %v1309 = vunpack.c.l.b16 %v1261
            %v1310 = vunpack.c.l.b16 %v1262
            %v1311 = vunpack.c.l.b16 %v1263
            %v1312 = vunpack.c.l.b16 %v1264
            %v1313 = vunpack.c.l.b16 %v1265
            %v1314 = vunpack.c.l.b16 %v1266
            %v1315 = vunpack.c.l.b16 %v1267
            %v1316 = vunpack.c.l.b16 %v1268
            %v1317 = vunpack.c.l.b16 %v1269
            %v1318 = vpack.c.b16 %v1303, %v1302
            %v1319 = vpack.c.b16 %v1305, %v1304
            %v1320 = vpack.c.b16 %v1307, %v1306
            %v1321 = vpack.c.b16 %v1309, %v1308
            %v1322 = vpack.c.b16 %v1311, %v1310
            %v1323 = vpack.c.b16 %v1313, %v1312
            %v1324 = vpack.c.b16 %v1315, %v1314
            %v1325 = vpack.c.b16 %v1317, %v1316
            %v1350 = vunpack.c.l.b16 %v1270
            %v1351 = vunpack.c.l.b16 %v1271
            %v1352 = vunpack.c.l.b16 %v1272
            %v1353 = vunpack.c.l.b16 %v1273
            %v1354 = vunpack.c.l.b16 %v1274
            %v1355 = vunpack.c.l.b16 %v1275
            %v1356 = vunpack.c.l.b16 %v1276
            %v1357 = vunpack.c.l.b16 %v1277
            %v1358 = vunpack.c.l.b16 %v1278
            %v1359 = vunpack.c.l.b16 %v1279
            %v1360 = vunpack.c.l.b16 %v1280
            %v1361 = vunpack.c.l.b16 %v1281
            %v1362 = vunpack.c.l.b16 %v1282
            %v1363 = vunpack.c.l.b16 %v1283
            %v1364 = vunpack.c.l.b16 %v1284
            %v1365 = vunpack.c.l.b16 %v1285
            %v1366 = vpack.c.b16 %v1351, %v1350
            %v1367 = vpack.c.b16 %v1353, %v1352
            %v1368 = vpack.c.b16 %v1355, %v1354
            %v1369 = vpack.c.b16 %v1357, %v1356
            %v1370 = vpack.c.b16 %v1359, %v1358
            %v1371 = vpack.c.b16 %v1361, %v1360
            %v1372 = vpack.c.b16 %v1363, %v1362
            %v1373 = vpack.c.b16 %v1365, %v1364
            %1382 = vmatprep.subr.bf16.mxu0 0
            %1383 = vmatpush1.bf16.msra.mxu0 %v1366
            %1384 = vmatprep.subr.bf16.mxu0 0
            %1385 = vmatpush1.bf16.msra.mxu0 %v1367
            %1386 = vmatprep.subr.bf16.mxu0 0
            %1387 = vmatpush1.bf16.msra.mxu0 %v1368
            %1388 = vmatprep.subr.bf16.mxu0 0
            %1389 = vmatpush1.bf16.msra.mxu0 %v1369
            %1390 = vmatprep.subr.bf16.mxu0 0
            %1391 = vmatpush1.bf16.msra.mxu0 %v1370
            %1392 = vmatprep.subr.bf16.mxu0 0
            %1393 = vmatpush1.bf16.msra.mxu0 %v1371
            %1394 = vmatprep.subr.bf16.mxu0 0
            %1395 = vmatpush1.bf16.msra.mxu0 %v1372
            %1396 = vmatprep.subr.bf16.mxu0 0
            %1397 = vmatpush1.bf16.msra.mxu0 %v1373
            %1398 = vmatprep.subr.bf16.mxu0 0
            %1399 = vmatpush1.bf16.msra.mxu0 0
            %1400 = vmatprep.subr.bf16.mxu0 0
            %1401 = vmatpush1.bf16.msra.mxu0 0
            %1402 = vmatprep.subr.bf16.mxu0 0
            %1403 = vmatpush1.bf16.msra.mxu0 0
            %1404 = vmatprep.subr.bf16.mxu0 0
            %1405 = vmatpush1.bf16.msra.mxu0 0
            %1406 = vmatprep.subr.bf16.mxu0 0
            %1407 = vmatpush1.bf16.msra.mxu0 0
            %1408 = vmatprep.subr.bf16.mxu0 0
            %1409 = vmatpush1.bf16.msra.mxu0 0
            %1410 = vmatprep.subr.bf16.mxu0 0
            %1411 = vmatpush1.bf16.msra.mxu0 0
            %1412 = vmatprep.subr.bf16.mxu0 0
            %1413 = vmatpush1.bf16.msra.mxu0 0
            %1414 = vmatprep.mubr.bf16.mxu0 0
            %1415 = vmatmul.mubr.bf16.gmra.mrb[0].mxu0 %v1318
            %v1416 = vpop.f32.mrb[0].mxu0
            %v1417 = vadd.f32 0.0, %v1416
            %v1418 = vpop.f32.mrb[0].mxu0
            %v1419 = vpop.f32.mrb[0].mxu0
            %v1420 = vadd.f32 0.0, %v1419
            %v1421 = vpop.f32.mrb[0].mxu0
            %1422 = vmatprep.mubr.bf16.mxu0 0
            %1423 = vmatmul.mubr.bf16.gmra.mrb[0].mxu0 %v1319
            %v1424 = vpop.f32.mrb[0].mxu0
            %v1425 = vadd.f32 0.0, %v1424
            %v1426 = vpop.f32.mrb[0].mxu0
            %v1427 = vpop.f32.mrb[0].mxu0
            %v1428 = vadd.f32 0.0, %v1427
            %v1429 = vpop.f32.mrb[0].mxu0
            %1430 = vmatprep.mubr.bf16.mxu0 0
            %1431 = vmatmul.mubr.bf16.gmra.mrb[0].mxu0 %v1320
            %v1432 = vpop.f32.mrb[0].mxu0
            %v1433 = vadd.f32 0.0, %v1432
            %v1434 = vpop.f32.mrb[0].mxu0
            %v1435 = vpop.f32.mrb[0].mxu0
            %v1436 = vadd.f32 0.0, %v1435
            %v1437 = vpop.f32.mrb[0].mxu0
            %1438 = vmatprep.mubr.bf16.mxu0 0
            %1439 = vmatmul.mubr.bf16.gmra.mrb[0].mxu0 %v1321
            %v1440 = vpop.f32.mrb[0].mxu0
            %v1441 = vadd.f32 0.0, %v1440
            %v1442 = vpop.f32.mrb[0].mxu0
            %v1443 = vpop.f32.mrb[0].mxu0
            %v1444 = vadd.f32 0.0, %v1443
            %v1445 = vpop.f32.mrb[0].mxu0
            %1446 = vmatprep.mubr.bf16.mxu0 0
            %1447 = vmatmul.mubr.bf16.gmra.mrb[0].mxu0 %v1322
            %v1448 = vpop.f32.mrb[0].mxu0
            %v1449 = vadd.f32 0.0, %v1448
            %v1450 = vpop.f32.mrb[0].mxu0
            %v1451 = vpop.f32.mrb[0].mxu0
            %v1452 = vadd.f32 0.0, %v1451
            %v1453 = vpop.f32.mrb[0].mxu0
            %1454 = vmatprep.mubr.bf16.mxu0 0
            %1455 = vmatmul.mubr.bf16.gmra.mrb[0].mxu0 %v1323
            %v1456 = vpop.f32.mrb[0].mxu0
            %v1457 = vadd.f32 0.0, %v1456
            %v1458 = vpop.f32.mrb[0].mxu0
            %v1459 = vpop.f32.mrb[0].mxu0
            %v1460 = vadd.f32 0.0, %v1459
            %v1461 = vpop.f32.mrb[0].mxu0
            %1462 = vmatprep.mubr.bf16.mxu0 0
            %1463 = vmatmul.mubr.bf16.gmra.mrb[0].mxu0 %v1324
            %v1464 = vpop.f32.mrb[0].mxu0
            %v1465 = vadd.f32 0.0, %v1464
            %v1466 = vpop.f32.mrb[0].mxu0
            %v1467 = vpop.f32.mrb[0].mxu0
            %v1468 = vadd.f32 0.0, %v1467
            %v1469 = vpop.f32.mrb[0].mxu0
            %1470 = vmatprep.mubr.bf16.mxu0 0
            %1471 = vmatmul.mubr.bf16.gmra.mrb[0].mxu0 %v1325
            %v1472 = vpop.f32.mrb[0].mxu0
            %v1473 = vadd.f32 0.0, %v1472
            %v1474 = vpop.f32.mrb[0].mxu0
            %v1475 = vpop.f32.mrb[0].mxu0
            %v1476 = vadd.f32 0.0, %v1475
            %v1477 = vpop.f32.mrb[0].mxu0
            %1478 = vdwg.mxu0
            %v1479 = vadd.f32 %v1238, %v1417
            %v1480 = vadd.f32 %v1239, %v1420
            %v1481 = vadd.f32 %v1240, %v1425
            %v1482 = vadd.f32 %v1241, %v1428
            %v1483 = vadd.f32 %v1242, %v1433
            %v1484 = vadd.f32 %v1243, %v1436
            %v1485 = vadd.f32 %v1244, %v1441
            %v1486 = vadd.f32 %v1245, %v1444
            %v1487 = vadd.f32 %v1246, %v1449
            %v1488 = vadd.f32 %v1247, %v1452
            %v1489 = vadd.f32 %v1248, %v1457
            %v1490 = vadd.f32 %v1249, %v1460
            %v1491 = vadd.f32 %v1250, %v1465
            %v1492 = vadd.f32 %v1251, %v1468
            %v1493 = vadd.f32 %v1252, %v1473
            %v1494 = vadd.f32 %v1253, %v1476
            %v1495 = vld [vmem:[%s7] sm:$0x1]
            %v1497 = vlaneseq
            %v1498 = vshrl.u32 %v1497, 7
            %v1499 = vsub.s32 0, %v1498
            %v1500 = vrot.slane %v1495, %v1499
            %v1502 = vadd.f32 %v1479, %v1500
            %v1503 = vadd.f32 %v1480, %v1500
            %v1504 = vadd.f32 %v1481, %v1500
            %v1505 = vadd.f32 %v1482, %v1500
            %v1506 = vadd.f32 %v1483, %v1500
            %v1507 = vadd.f32 %v1484, %v1500
            %v1508 = vadd.f32 %v1485, %v1500
            %v1509 = vadd.f32 %v1486, %v1500
            %v1510 = vadd.f32 %v1487, %v1500
            %v1511 = vadd.f32 %v1488, %v1500
            %v1512 = vadd.f32 %v1489, %v1500
            %v1513 = vadd.f32 %v1490, %v1500
            %v1514 = vadd.f32 %v1491, %v1500
            %v1515 = vadd.f32 %v1492, %v1500
            %v1516 = vadd.f32 %v1493, %v1500
            %v1517 = vadd.f32 %v1494, %v1500
            %v1518 = vmax.f32 %v1502, 0.0
            %v1519 = vmax.f32 %v1503, 0.0
            %v1520 = vmax.f32 %v1504, 0.0
            %v1521 = vmax.f32 %v1505, 0.0
            %v1522 = vmax.f32 %v1506, 0.0
            %v1523 = vmax.f32 %v1507, 0.0
            %v1524 = vmax.f32 %v1508, 0.0
            %v1525 = vmax.f32 %v1509, 0.0
            %v1526 = vmax.f32 %v1510, 0.0
            %v1527 = vmax.f32 %v1511, 0.0
            %v1528 = vmax.f32 %v1512, 0.0
            %v1529 = vmax.f32 %v1513, 0.0
            %v1530 = vmax.f32 %v1514, 0.0
            %v1531 = vmax.f32 %v1515, 0.0
            %v1532 = vmax.f32 %v1516, 0.0
            %v1533 = vmax.f32 %v1517, 0.0
            %v1534 = vpack.c.bf16 %v1519, %v1518
            %v1535 = vpack.c.bf16 %v1521, %v1520
            %v1536 = vpack.c.bf16 %v1523, %v1522
            %v1537 = vpack.c.bf16 %v1525, %v1524
            %v1538 = vpack.c.bf16 %v1527, %v1526
            %v1539 = vpack.c.bf16 %v1529, %v1528
            %v1540 = vpack.c.bf16 %v1531, %v1530
            %v1541 = vpack.c.bf16 %v1533, %v1532
            %1542 = vst [vmem:[#allocation2] sm:$0xff] %v1534
            %1543 = vst [vmem:[#allocation2 + $0x8] sm:$0xff] %v1535
            %1544 = vst [vmem:[#allocation2 + $0x10] sm:$0xff] %v1536
            %1545 = vst [vmem:[#allocation2 + $0x18] sm:$0xff] %v1537
            %1546 = vst [vmem:[#allocation2 + $0x20] sm:$0xff] %v1538
            %1547 = vst [vmem:[#allocation2 + $0x28] sm:$0xff] %v1539
            %1548 = vst [vmem:[#allocation2 + $0x30] sm:$0xff] %v1540
            %1549 = vst [vmem:[#allocation2 + $0x38] sm:$0xff] %v1541
          $region92: #{tpu_custom_call.1} parent=87 // pred_fallthru
            _
          // Predicated region
          $region93: #{tpu_custom_call.1} parent=87 // pred_check
            %p1550 = pneg %p790
          $region94: #{tpu_custom_call.1} parent=87 // pred_check_branch
            %1552 = sbr.rel (%p1550) target = $region96
          $region95: #{tpu_custom_call.1} parent=87 // pred_region
            %v1553 = vld [vmem:[#allocation11] sm:$0xff]
            %v1554 = vld [vmem:[#allocation11 + $0x8] sm:$0xff]
            %v1555 = vld [vmem:[#allocation11 + $0x10] sm:$0xff]
            %v1556 = vld [vmem:[#allocation11 + $0x18] sm:$0xff]
            %v1557 = vld [vmem:[#allocation11 + $0x20] sm:$0xff]
            %v1558 = vld [vmem:[#allocation11 + $0x28] sm:$0xff]
            %v1559 = vld [vmem:[#allocation11 + $0x30] sm:$0xff]
            %v1560 = vld [vmem:[#allocation11 + $0x38] sm:$0xff]
            %v1561 = vld [vmem:[#allocation11 + $0x40] sm:$0xff]
            %v1562 = vld [vmem:[#allocation11 + $0x48] sm:$0xff]
            %v1563 = vld [vmem:[#allocation11 + $0x50] sm:$0xff]
            %v1564 = vld [vmem:[#allocation11 + $0x58] sm:$0xff]
            %v1565 = vld [vmem:[#allocation11 + $0x60] sm:$0xff]
            %v1566 = vld [vmem:[#allocation11 + $0x68] sm:$0xff]
            %v1567 = vld [vmem:[#allocation11 + $0x70] sm:$0xff]
            %v1568 = vld [vmem:[#allocation11 + $0x78] sm:$0xff]
            %v1569 = vld [vmem:[%s1] sm:$0xff]
            %v1570 = vld [vmem:[%s1 + $0x8] sm:$0xff]
            %v1571 = vld [vmem:[%s1 + $0x10] sm:$0xff]
            %v1572 = vld [vmem:[%s1 + $0x18] sm:$0xff]
            %v1573 = vld [vmem:[%s1 + $0x20] sm:$0xff]
            %v1574 = vld [vmem:[%s1 + $0x28] sm:$0xff]
            %v1575 = vld [vmem:[%s1 + $0x30] sm:$0xff]
            %v1576 = vld [vmem:[%s1 + $0x38] sm:$0xff]
            %v1577 = vld [vmem:[%s1 + $0x40] sm:$0xff]
            %v1578 = vld [vmem:[%s1 + $0x48] sm:$0xff]
            %v1579 = vld [vmem:[%s1 + $0x50] sm:$0xff]
            %v1580 = vld [vmem:[%s1 + $0x58] sm:$0xff]
            %v1581 = vld [vmem:[%s1 + $0x60] sm:$0xff]
            %v1582 = vld [vmem:[%s1 + $0x68] sm:$0xff]
            %v1583 = vld [vmem:[%s1 + $0x70] sm:$0xff]
            %v1584 = vld [vmem:[%s1 + $0x78] sm:$0xff]
            %1586 = vset.pattern.permute.xlu0 0
            %1587 = vperm.xlu0 %1586, %v1569
            %v1588 = vpop.permute.xlu0 %1587
            %1591 = vset.pattern.permute.xlu0 0
            %1592 = vperm.xlu0 %1591, %v1570
            %v1593 = vpop.permute.xlu0 %1592
            %1596 = vset.pattern.permute.xlu0 0
            %1597 = vperm.xlu0 %1596, %v1571
            %v1598 = vpop.permute.xlu0 %1597
            %1601 = vset.pattern.permute.xlu0 0
            %1602 = vperm.xlu0 %1601, %v1572
            %v1603 = vpop.permute.xlu0 %1602
            %1606 = vset.pattern.permute.xlu0 0
            %1607 = vperm.xlu0 %1606, %v1573
            %v1608 = vpop.permute.xlu0 %1607
            %1611 = vset.pattern.permute.xlu0 0
            %1612 = vperm.xlu0 %1611, %v1574
            %v1613 = vpop.permute.xlu0 %1612
            %1616 = vset.pattern.permute.xlu0 0
            %1617 = vperm.xlu0 %1616, %v1575
            %v1618 = vpop.permute.xlu0 %1617
            %1621 = vset.pattern.permute.xlu0 0
            %1622 = vperm.xlu0 %1621, %v1576
            %v1623 = vpop.permute.xlu0 %1622
            %1626 = vset.pattern.permute.xlu0 0
            %1627 = vperm.xlu0 %1626, %v1577
            %v1628 = vpop.permute.xlu0 %1627
            %1631 = vset.pattern.permute.xlu0 0
            %1632 = vperm.xlu0 %1631, %v1578
            %v1633 = vpop.permute.xlu0 %1632
            %1636 = vset.pattern.permute.xlu0 0
            %1637 = vperm.xlu0 %1636, %v1579
            %v1638 = vpop.permute.xlu0 %1637
            %1641 = vset.pattern.permute.xlu0 0
            %1642 = vperm.xlu0 %1641, %v1580
            %v1643 = vpop.permute.xlu0 %1642
            %1646 = vset.pattern.permute.xlu0 0
            %1647 = vperm.xlu0 %1646, %v1581
            %v1648 = vpop.permute.xlu0 %1647
            %1651 = vset.pattern.permute.xlu0 0
            %1652 = vperm.xlu0 %1651, %v1582
            %v1653 = vpop.permute.xlu0 %1652
            %1656 = vset.pattern.permute.xlu0 0
            %1657 = vperm.xlu0 %1656, %v1583
            %v1658 = vpop.permute.xlu0 %1657
            %1661 = vset.pattern.permute.xlu0 0
            %1662 = vperm.xlu0 %1661, %v1584
            %v1663 = vpop.permute.xlu0 %1662
            %v1665 = vmul.f32 %v1553, %v1588
            %v1666 = vmul.f32 %v1554, %v1593
            %v1667 = vmul.f32 %v1555, %v1598
            %v1668 = vmul.f32 %v1556, %v1603
            %v1669 = vmul.f32 %v1557, %v1608
            %v1670 = vmul.f32 %v1558, %v1613
            %v1671 = vmul.f32 %v1559, %v1618
            %v1672 = vmul.f32 %v1560, %v1623
            %v1673 = vmul.f32 %v1561, %v1628
            %v1674 = vmul.f32 %v1562, %v1633
            %v1675 = vmul.f32 %v1563, %v1638
            %v1676 = vmul.f32 %v1564, %v1643
            %v1677 = vmul.f32 %v1565, %v1648
            %v1678 = vmul.f32 %v1566, %v1653
            %v1679 = vmul.f32 %v1567, %v1658
            %v1680 = vmul.f32 %v1568, %v1663
            %v1681 = vld [vmem:[#allocation2] sm:$0xff]
            %v1682 = vld [vmem:[#allocation2 + $0x8] sm:$0xff]
            %v1683 = vld [vmem:[#allocation2 + $0x10] sm:$0xff]
            %v1684 = vld [vmem:[#allocation2 + $0x18] sm:$0xff]
            %v1685 = vld [vmem:[#allocation2 + $0x20] sm:$0xff]
            %v1686 = vld [vmem:[#allocation2 + $0x28] sm:$0xff]
            %v1687 = vld [vmem:[#allocation2 + $0x30] sm:$0xff]
            %v1688 = vld [vmem:[#allocation2 + $0x38] sm:$0xff]
            %v1689 = vld [vmem:[#allocation8] sm:$0xf]
            %v1690 = vld [vmem:[#allocation8 + $0x4] sm:$0xf]
            %v1691 = vld [vmem:[#allocation8 + $0x8] sm:$0xf]
            %v1692 = vld [vmem:[#allocation8 + $0xc] sm:$0xf]
            %v1693 = vld [vmem:[#allocation8 + $0x10] sm:$0xf]
            %v1694 = vld [vmem:[#allocation8 + $0x14] sm:$0xf]
            %v1695 = vld [vmem:[#allocation8 + $0x18] sm:$0xf]
            %v1696 = vld [vmem:[#allocation8 + $0x1c] sm:$0xf]
            %v1697 = vld [vmem:[#allocation8 + $0x20] sm:$0xf]
            %v1698 = vld [vmem:[#allocation8 + $0x24] sm:$0xf]
            %v1699 = vld [vmem:[#allocation8 + $0x28] sm:$0xf]
            %v1700 = vld [vmem:[#allocation8 + $0x2c] sm:$0xf]
            %v1701 = vld [vmem:[#allocation8 + $0x30] sm:$0xf]
            %v1702 = vld [vmem:[#allocation8 + $0x34] sm:$0xf]
            %v1703 = vld [vmem:[#allocation8 + $0x38] sm:$0xf]
            %v1704 = vld [vmem:[#allocation8 + $0x3c] sm:$0xf]
            %v1721 = vunpack.c.l.b16 %v1689
            %v1722 = vunpack.c.l.b16 %v1690
            %v1723 = vunpack.c.l.b16 %v1691
            %v1724 = vunpack.c.l.b16 %v1692
            %v1725 = vunpack.c.l.b16 %v1693
            %v1726 = vunpack.c.l.b16 %v1694
            %v1727 = vunpack.c.l.b16 %v1695
            %v1728 = vunpack.c.l.b16 %v1696
            %v1729 = vunpack.c.l.b16 %v1697
            %v1730 = vunpack.c.l.b16 %v1698
            %v1731 = vunpack.c.l.b16 %v1699
            %v1732 = vunpack.c.l.b16 %v1700
            %v1733 = vunpack.c.l.b16 %v1701
            %v1734 = vunpack.c.l.b16 %v1702
            %v1735 = vunpack.c.l.b16 %v1703
            %v1736 = vunpack.c.l.b16 %v1704
            %v1737 = vpack.c.b16 %v1722, %v1721
            %v1738 = vpack.c.b16 %v1724, %v1723
            %v1739 = vpack.c.b16 %v1726, %v1725
            %v1740 = vpack.c.b16 %v1728, %v1727
            %v1741 = vpack.c.b16 %v1730, %v1729
            %v1742 = vpack.c.b16 %v1732, %v1731
            %v1743 = vpack.c.b16 %v1734, %v1733
            %v1744 = vpack.c.b16 %v1736, %v1735
            %1753 = vmatprep.subr.bf16.mxu0 0
            %1754 = vmatpush1.bf16.msra.mxu0 %v1737
            %1755 = vmatprep.subr.bf16.mxu0 0
            %1756 = vmatpush1.bf16.msra.mxu0 %v1738
            %1757 = vmatprep.subr.bf16.mxu0 0
            %1758 = vmatpush1.bf16.msra.mxu0 %v1739
            %1759 = vmatprep.subr.bf16.mxu0 0
            %1760 = vmatpush1.bf16.msra.mxu0 %v1740
            %1761 = vmatprep.subr.bf16.mxu0 0
            %1762 = vmatpush1.bf16.msra.mxu0 %v1741
            %1763 = vmatprep.subr.bf16.mxu0 0
            %1764 = vmatpush1.bf16.msra.mxu0 %v1742
            %1765 = vmatprep.subr.bf16.mxu0 0
            %1766 = vmatpush1.bf16.msra.mxu0 %v1743
            %1767 = vmatprep.subr.bf16.mxu0 0
            %1768 = vmatpush1.bf16.msra.mxu0 %v1744
            %1769 = vmatprep.subr.bf16.mxu0 0
            %1770 = vmatpush1.bf16.msra.mxu0 0
            %1771 = vmatprep.subr.bf16.mxu0 0
            %1772 = vmatpush1.bf16.msra.mxu0 0
            %1773 = vmatprep.subr.bf16.mxu0 0
            %1774 = vmatpush1.bf16.msra.mxu0 0
            %1775 = vmatprep.subr.bf16.mxu0 0
            %1776 = vmatpush1.bf16.msra.mxu0 0
            %1777 = vmatprep.subr.bf16.mxu0 0
            %1778 = vmatpush1.bf16.msra.mxu0 0
            %1779 = vmatprep.subr.bf16.mxu0 0
            %1780 = vmatpush1.bf16.msra.mxu0 0
            %1781 = vmatprep.subr.bf16.mxu0 0
            %1782 = vmatpush1.bf16.msra.mxu0 0
            %1783 = vmatprep.subr.bf16.mxu0 0
            %1784 = vmatpush1.bf16.msra.mxu0 0
            %1785 = vmatprep.mubr.bf16.mxu0 0
            %1786 = vmatmul.mubr.bf16.gmra.mrb[0].mxu0 %v1681
            %v1787 = vpop.f32.mrb[0].mxu0
            %v1788 = vadd.f32 0.0, %v1787
            %v1789 = vpop.f32.mrb[0].mxu0
            %v1790 = vpop.f32.mrb[0].mxu0
            %v1791 = vadd.f32 0.0, %v1790
            %v1792 = vpop.f32.mrb[0].mxu0
            %1793 = vmatprep.mubr.bf16.mxu0 0
            %1794 = vmatmul.mubr.bf16.gmra.mrb[0].mxu0 %v1682
            %v1795 = vpop.f32.mrb[0].mxu0
            %v1796 = vadd.f32 0.0, %v1795
            %v1797 = vpop.f32.mrb[0].mxu0
            %v1798 = vpop.f32.mrb[0].mxu0
            %v1799 = vadd.f32 0.0, %v1798
            %v1800 = vpop.f32.mrb[0].mxu0
            %1801 = vmatprep.mubr.bf16.mxu0 0
            %1802 = vmatmul.mubr.bf16.gmra.mrb[0].mxu0 %v1683
            %v1803 = vpop.f32.mrb[0].mxu0
            %v1804 = vadd.f32 0.0, %v1803
            %v1805 = vpop.f32.mrb[0].mxu0
            %v1806 = vpop.f32.mrb[0].mxu0
            %v1807 = vadd.f32 0.0, %v1806
            %v1808 = vpop.f32.mrb[0].mxu0
            %1809 = vmatprep.mubr.bf16.mxu0 0
            %1810 = vmatmul.mubr.bf16.gmra.mrb[0].mxu0 %v1684
            %v1811 = vpop.f32.mrb[0].mxu0
            %v1812 = vadd.f32 0.0, %v1811
            %v1813 = vpop.f32.mrb[0].mxu0
            %v1814 = vpop.f32.mrb[0].mxu0
            %v1815 = vadd.f32 0.0, %v1814
            %v1816 = vpop.f32.mrb[0].mxu0
            %1817 = vmatprep.mubr.bf16.mxu0 0
            %1818 = vmatmul.mubr.bf16.gmra.mrb[0].mxu0 %v1685
            %v1819 = vpop.f32.mrb[0].mxu0
            %v1820 = vadd.f32 0.0, %v1819
            %v1821 = vpop.f32.mrb[0].mxu0
            %v1822 = vpop.f32.mrb[0].mxu0
            %v1823 = vadd.f32 0.0, %v1822
            %v1824 = vpop.f32.mrb[0].mxu0
            %1825 = vmatprep.mubr.bf16.mxu0 0
            %1826 = vmatmul.mubr.bf16.gmra.mrb[0].mxu0 %v1686
            %v1827 = vpop.f32.mrb[0].mxu0
            %v1828 = vadd.f32 0.0, %v1827
            %v1829 = vpop.f32.mrb[0].mxu0
            %v1830 = vpop.f32.mrb[0].mxu0
            %v1831 = vadd.f32 0.0, %v1830
            %v1832 = vpop.f32.mrb[0].mxu0
            %1833 = vmatprep.mubr.bf16.mxu0 0
            %1834 = vmatmul.mubr.bf16.gmra.mrb[0].mxu0 %v1687
            %v1835 = vpop.f32.mrb[0].mxu0
            %v1836 = vadd.f32 0.0, %v1835
            %v1837 = vpop.f32.mrb[0].mxu0
            %v1838 = vpop.f32.mrb[0].mxu0
            %v1839 = vadd.f32 0.0, %v1838
            %v1840 = vpop.f32.mrb[0].mxu0
            %1841 = vmatprep.mubr.bf16.mxu0 0
            %1842 = vmatmul.mubr.bf16.gmra.mrb[0].mxu0 %v1688
            %v1843 = vpop.f32.mrb[0].mxu0
            %v1844 = vadd.f32 0.0, %v1843
            %v1845 = vpop.f32.mrb[0].mxu0
            %v1846 = vpop.f32.mrb[0].mxu0
            %v1847 = vadd.f32 0.0, %v1846
            %v1848 = vpop.f32.mrb[0].mxu0
            %1849 = vdwg.mxu0
            %v1850 = vadd.f32 %v1665, %v1788
            %v1851 = vadd.f32 %v1666, %v1791
            %v1852 = vadd.f32 %v1667, %v1796
            %v1853 = vadd.f32 %v1668, %v1799
            %v1854 = vadd.f32 %v1669, %v1804
            %v1855 = vadd.f32 %v1670, %v1807
            %v1856 = vadd.f32 %v1671, %v1812
            %v1857 = vadd.f32 %v1672, %v1815
            %v1858 = vadd.f32 %v1673, %v1820
            %v1859 = vadd.f32 %v1674, %v1823
            %v1860 = vadd.f32 %v1675, %v1828
            %v1861 = vadd.f32 %v1676, %v1831
            %v1862 = vadd.f32 %v1677, %v1836
            %v1863 = vadd.f32 %v1678, %v1839
            %v1864 = vadd.f32 %v1679, %v1844
            %v1865 = vadd.f32 %v1680, %v1847
            %v1866 = vld [vmem:[%s8] sm:$0x1]
            %v1868 = vlaneseq
            %v1869 = vshrl.u32 %v1868, 7
            %v1870 = vsub.s32 0, %v1869
            %v1871 = vrot.slane %v1866, %v1870
            %v1873 = vadd.f32 %v1850, %v1871
            %v1874 = vadd.f32 %v1851, %v1871
            %v1875 = vadd.f32 %v1852, %v1871
            %v1876 = vadd.f32 %v1853, %v1871
            %v1877 = vadd.f32 %v1854, %v1871
            %v1878 = vadd.f32 %v1855, %v1871
            %v1879 = vadd.f32 %v1856, %v1871
            %v1880 = vadd.f32 %v1857, %v1871
            %v1881 = vadd.f32 %v1858, %v1871
            %v1882 = vadd.f32 %v1859, %v1871
            %v1883 = vadd.f32 %v1860, %v1871
            %v1884 = vadd.f32 %v1861, %v1871
            %v1885 = vadd.f32 %v1862, %v1871
            %v1886 = vadd.f32 %v1863, %v1871
            %v1887 = vadd.f32 %v1864, %v1871
            %v1888 = vadd.f32 %v1865, %v1871
            %1889 = vst [vmem:[#allocation11] sm:$0xff] %v1873
            %1890 = vst [vmem:[#allocation11 + $0x8] sm:$0xff] %v1874
            %1891 = vst [vmem:[#allocation11 + $0x10] sm:$0xff] %v1875
            %1892 = vst [vmem:[#allocation11 + $0x18] sm:$0xff] %v1876
            %1893 = vst [vmem:[#allocation11 + $0x20] sm:$0xff] %v1877
            %1894 = vst [vmem:[#allocation11 + $0x28] sm:$0xff] %v1878
            %1895 = vst [vmem:[#allocation11 + $0x30] sm:$0xff] %v1879
            %1896 = vst [vmem:[#allocation11 + $0x38] sm:$0xff] %v1880
            %1897 = vst [vmem:[#allocation11 + $0x40] sm:$0xff] %v1881
            %1898 = vst [vmem:[#allocation11 + $0x48] sm:$0xff] %v1882
            %1899 = vst [vmem:[#allocation11 + $0x50] sm:$0xff] %v1883
            %1900 = vst [vmem:[#allocation11 + $0x58] sm:$0xff] %v1884
            %1901 = vst [vmem:[#allocation11 + $0x60] sm:$0xff] %v1885
            %1902 = vst [vmem:[#allocation11 + $0x68] sm:$0xff] %v1886
            %1903 = vst [vmem:[#allocation11 + $0x70] sm:$0xff] %v1887
            %1904 = vst [vmem:[#allocation11 + $0x78] sm:$0xff] %v1888
          $region96: #{tpu_custom_call.1} parent=87 // pred_fallthru
            _
        $region88: #{tpu_custom_call.1} parent=55 // pred_fallthru
          _
        // Predicated region
        $region97: #{tpu_custom_call.1} parent=55 // pred_check
          %p1905 = pneg %p238
        $region98: #{tpu_custom_call.1} parent=55 // pred_check_branch
          %1907 = sbr.rel (%p1905) target = $region100
        $region99: #{tpu_custom_call.1} parent=55 // pred_region
          %s1909 = ssub.s32 2048, 2048
          %1910 = vsyncadd [#allocation5], %s1909
          %s1911 = sshll.u32 [#allocation11], 4
          %s1912 = int_to_ptr.vmem [resolvable:$true] %s1911
          %1917 = dma.vmem_to_hbm [thread:$0]  %s1912, 2048, %s9, [#allocation5], 128, 128, 8
        $region100: #{tpu_custom_call.1} parent=55 // pred_fallthru
          _
        // Predicated region
        $region101: #{tpu_custom_call.1} parent=55 // pred_check
          %p1918 = pneg %p238
        $region102: #{tpu_custom_call.1} parent=55 // pred_check_branch
          %1920 = sbr.rel (%p1918) target = $region104
        $region103: #{tpu_custom_call.1} parent=55 // pred_region
          %1921 = dma.done [#allocation5], 2048
        $region104: #{tpu_custom_call.1} parent=55 // pred_fallthru
          _
      $region56: #{tpu_custom_call.1} parent=5 // pred_fallthru
        _
      %p1922 = scmp.le.s32.totalorder 2, %s19
      // Predicated region
      $region105: #{tpu_custom_call.1} parent=5 // pred_check
        %p1923 = pneg %p1922
      $region106: #{tpu_custom_call.1} parent=5 // pred_check_branch
        %1925 = sbr.rel (%p1923) target = $region108
      $region107: #{tpu_custom_call.1} parent=5 // pred_region
        %s1926 = ssub.s32 %s19, 2
      $region108: #{tpu_custom_call.1} parent=5 // pred_fallthru
        _
    $region6: #{tpu_custom_call.1} parent=1 // loop_footer
      %s23 = sadd.s32 1, %s19
    $region7: #{tpu_custom_call.1} parent=1 // loop_footer_branch
      %18 = sbr.rel target = $region3
    $region8: #{tpu_custom_call.1} parent=1 // loop_exit
      _
    %1927 = vsyncpa [#allocation4], 1
    %s1928 = scalar_lea.sflag [#allocation4], 1
    %1929 = vsyncpa %s1928, 1
    %1930 = vsyncpa [#allocation7], 1
    %1931 = vsyncpa [#allocation10], 1
    %1932 = vsyncpa [#allocation5], 1
    %s1933 = scalar_lea.sflag [#allocation5], 1
    %1934 = vsyncpa %s1933, 1

</llo_original>
